<compile_context>
chip_gen: v5e
topology: v5e:2x2
jax: 0.10.0
libtpu: 0.0.40
codegen_flags: <defaults>
</compile_context>

<pallas_src>
import jax
import jax.numpy as jnp
from jax.experimental import pallas as pl
from jax.experimental.pallas import tpu as pltpu

REPARAM_NOISE = 1e-6


def actor_kernel(x_ref, w1_ref, b1_ref, w2_ref, b2_ref,
                 wmu_ref, bmu_ref, ws_ref, bs_ref,
                 mu_ref, sigma_ref):
    # fc1 + relu  (bf16 MXU operands, f32 accumulation)
    x = x_ref[...].astype(jnp.bfloat16)
    h1 = jnp.dot(x, w1_ref[...], preferred_element_type=jnp.float32) + b1_ref[...]
    h1 = jnp.maximum(h1, 0.0)

    # fc2 + relu
    h2 = jnp.dot(h1.astype(jnp.bfloat16), w2_ref[...],
                 preferred_element_type=jnp.float32) + b2_ref[...]
    h2 = jnp.maximum(h2, 0.0)
    h2b = h2.astype(jnp.bfloat16)

    # mu head
    mu = jnp.dot(h2b, wmu_ref[...], preferred_element_type=jnp.float32) + bmu_ref[...]

    # sigma head: sigmoid then clamp to [reparam_noise, 1]
    z = jnp.dot(h2b, ws_ref[...], preferred_element_type=jnp.float32) + bs_ref[...]
    sigma = 1.0 / (1.0 + jnp.exp(-z))
    sigma = jnp.clip(sigma, REPARAM_NOISE, 1.0)

    mu_ref[...] = mu.astype(mu_ref.dtype)
    sigma_ref[...] = sigma.astype(sigma_ref.dtype)


def actor_forward(state, params, *, tb=256):
    """Fused actor forward. Returns (mu, sigma), each [B, n_actions] f32."""
    w1, b1, w2, b2, wmu, bmu, ws, bs = params
    B, S = state.shape
    FC1 = w1.shape[1]
    FC2 = w2.shape[1]
    A = wmu.shape[1]

    # Batch tiling: one block when B is small; otherwise TB-row tiles with the
    # batch padded up to a multiple of TB (sliced off afterwards).
    TB = B if B <= tb else tb
    Bp = pl.cdiv(B, TB) * TB
    if Bp != B:
        state = jnp.pad(state, ((0, Bp - B), (0, 0)))
    nb = Bp // TB

    row_spec = lambda shape: pl.BlockSpec(shape, lambda i: (i, 0))  # batch-tiled
    fix_spec = lambda shape: pl.BlockSpec(shape, lambda i: (0, 0))  # VMEM-resident

    mu, sigma = pl.pallas_call(
        actor_kernel,
        out_shape=(jax.ShapeDtypeStruct((Bp, A), jnp.float32),
                   jax.ShapeDtypeStruct((Bp, A), jnp.float32)),
        grid=(nb,),
        in_specs=[
            row_spec((TB, S)),
            fix_spec((S, FC1)), fix_spec((1, FC1)),
            fix_spec((FC1, FC2)), fix_spec((1, FC2)),
            fix_spec((FC2, A)), fix_spec((1, A)),
            fix_spec((FC2, A)), fix_spec((1, A)),
        ],
        out_specs=(row_spec((TB, A)), row_spec((TB, A))),
        compiler_params=pltpu.CompilerParams(
            dimension_semantics=("parallel",)),
    )(state, w1, b1, w2, b2, wmu, bmu, ws, bs)

    if Bp != B:
        mu, sigma = mu[:B], sigma[:B]
    return mu, sigma


def init_params(key, state_dims, n_actions, fc1_dims=512, fc2_dims=512):
    """PyTorch nn.Linear-style init (uniform +/- 1/sqrt(fan_in)).
    Weights are stored pre-transposed [in, out] and quantized to bf16;
    biases stay f32 with shape [1, out]."""
    ks = jax.random.split(key, 8)

    def linear(kw, kb, fan_in, fan_out):
        bound = 1.0 / (fan_in ** 0.5)
        w = jax.random.uniform(kw, (fan_in, fan_out), jnp.float32, -bound, bound)
        b = jax.random.uniform(kb, (1, fan_out), jnp.float32, -bound, bound)
        return w.astype(jnp.bfloat16), b

    w1, b1 = linear(ks[0], ks[1], state_dims, fc1_dims)
    w2, b2 = linear(ks[2], ks[3], fc1_dims, fc2_dims)
    wmu, bmu = linear(ks[4], ks[5], fc2_dims, n_actions)
    ws, bs = linear(ks[6], ks[7], fc2_dims, n_actions)
    return (w1, b1, w2, b2, wmu, bmu, ws, bs)


def reference_forward(state, params):
    """Pure-JAX f32 reference using the same (bf16-quantized) weights."""
    w1, b1, w2, b2, wmu, bmu, ws, bs = params
    f = lambda w: w.astype(jnp.float32)
    h1 = jnp.maximum(state @ f(w1) + b1, 0.0)
    h2 = jnp.maximum(h1 @ f(w2) + b2, 0.0)
    mu = h2 @ f(wmu) + bmu
    sigma = jnp.clip(jax.nn.sigmoid(h2 @ f(ws) + bs), REPARAM_NOISE, 1.0)
    return mu, sigma


if __name__ == "__main__":
    key = jax.random.PRNGKey(0)
    k_params, k_state = jax.random.split(key)

    # Small shapes consistent with the module: state_dims=12, n_actions=4, batch=8.
    B, S, A = 8, 12, 4
    FC1, FC2 = 512, 512

    params = init_params(k_params, S, A, FC1, FC2)
    state = jax.random.normal(k_state, (B, S), jnp.float32)

    mu, sigma = actor_forward(state, params)
    (mu, sigma) = jax.block_until_ready((mu, sigma))

    mu_ref, sigma_ref = reference_forward(state, params)
    assert mu.shape == (B, A) and sigma.shape == (B, A)
    assert jnp.allclose(mu, mu_ref, atol=2e-2, rtol=2e-2), (mu, mu_ref)
    assert jnp.allclose(sigma, sigma_ref, atol=2e-2, rtol=2e-2), (sigma, sigma_ref)
    assert bool(jnp.all(sigma >= REPARAM_NOISE - 1e-9))
    assert bool(jnp.all(sigma <= 1.0 + 1e-9))

    print("KERNEL_OK")
</pallas_src>

<mosaic_0001>
module attributes {stable_mosaic.version = 11 : i64} {
  func.func @actor_kernel(%arg0: i32, %arg1: memref<8x12xf32, #tpu.memory_space<vmem>>, %arg2: memref<12x512xbf16, #tpu.memory_space<vmem>>, %arg3: memref<1x512xf32, #tpu.memory_space<vmem>>, %arg4: memref<512x512xbf16, #tpu.memory_space<vmem>>, %arg5: memref<1x512xf32, #tpu.memory_space<vmem>>, %arg6: memref<512x4xbf16, #tpu.memory_space<vmem>>, %arg7: memref<1x4xf32, #tpu.memory_space<vmem>>, %arg8: memref<512x4xbf16, #tpu.memory_space<vmem>>, %arg9: memref<1x4xf32, #tpu.memory_space<vmem>>, %arg10: memref<8x4xf32, #tpu.memory_space<vmem>>, %arg11: memref<8x4xf32, #tpu.memory_space<vmem>>) attributes {dimension_semantics = [#tpu.dimension_semantics<parallel>], iteration_bounds = array<i64: 1>, scalar_prefetch = 0 : i64, scratch_operands = 0 : i64, tpu.core_type = #tpu.core_type<tc>, window_params = [{transform_indices = @transform_0, window_bounds = array<i64: 8, 12>}, {pipeline_mode = #tpu.pipeline_mode<synchronous>, transform_indices = @transform_1, window_bounds = array<i64: 12, 512>}, {pipeline_mode = #tpu.pipeline_mode<synchronous>, transform_indices = @transform_2, window_bounds = array<i64: 1, 512>}, {pipeline_mode = #tpu.pipeline_mode<synchronous>, transform_indices = @transform_3, window_bounds = array<i64: 512, 512>}, {pipeline_mode = #tpu.pipeline_mode<synchronous>, transform_indices = @transform_4, window_bounds = array<i64: 1, 512>}, {pipeline_mode = #tpu.pipeline_mode<synchronous>, transform_indices = @transform_5, window_bounds = array<i64: 512, 4>}, {pipeline_mode = #tpu.pipeline_mode<synchronous>, transform_indices = @transform_6, window_bounds = array<i64: 1, 4>}, {pipeline_mode = #tpu.pipeline_mode<synchronous>, transform_indices = @transform_7, window_bounds = array<i64: 512, 4>}, {pipeline_mode = #tpu.pipeline_mode<synchronous>, transform_indices = @transform_8, window_bounds = array<i64: 1, 4>}, {transform_indices = @transform_9, window_bounds = array<i64: 8, 4>}, {transform_indices = @transform_10, window_bounds = array<i64: 8, 4>}]} {
    %c0 = arith.constant 0 : index
    %c0_0 = arith.constant 0 : index
    %0 = vector.load %arg1[%c0, %c0_0] : memref<8x12xf32, #tpu.memory_space<vmem>>, vector<8x12xf32>
    %1 = arith.truncf %0 : vector<8x12xf32> to vector<8x12xbf16>
    %c0_1 = arith.constant 0 : index
    %c0_2 = arith.constant 0 : index
    %2 = vector.load %arg2[%c0_1, %c0_2] : memref<12x512xbf16, #tpu.memory_space<vmem>>, vector<12x512xbf16>
    %cst = arith.constant dense<0.000000e+00> : vector<8x512xf32>
    %3 = tpu.matmul %1, %2, %cst {dimension_numbers = #tpu.dot_dimension_numbers<[1], [0], [0], [1], [0, 0, 1, 1], [], []>} : vector<8x12xbf16>, vector<12x512xbf16>, vector<8x512xf32> -> vector<8x512xf32>
    %c0_3 = arith.constant 0 : index
    %c0_4 = arith.constant 0 : index
    %4 = vector.load %arg3[%c0_3, %c0_4] : memref<1x512xf32, #tpu.memory_space<vmem>>, vector<1x512xf32>
    %5 = vector.broadcast %4 : vector<1x512xf32> to vector<8x512xf32>
    %6 = arith.addf %3, %5 : vector<8x512xf32>
    %cst_5 = arith.constant 0.000000e+00 : f32
    %7 = vector.broadcast %cst_5 : f32 to vector<8x512xf32>
    %8 = arith.maximumf %6, %7 : vector<8x512xf32>
    %9 = arith.truncf %8 : vector<8x512xf32> to vector<8x512xbf16>
    %c0_6 = arith.constant 0 : index
    %c0_7 = arith.constant 0 : index
    %10 = vector.load %arg4[%c0_6, %c0_7] : memref<512x512xbf16, #tpu.memory_space<vmem>>, vector<512x512xbf16>
    %cst_8 = arith.constant dense<0.000000e+00> : vector<8x512xf32>
    %11 = tpu.matmul %9, %10, %cst_8 {dimension_numbers = #tpu.dot_dimension_numbers<[1], [0], [0], [1], [0, 0, 1, 1], [], []>} : vector<8x512xbf16>, vector<512x512xbf16>, vector<8x512xf32> -> vector<8x512xf32>
    %c0_9 = arith.constant 0 : index
    %c0_10 = arith.constant 0 : index
    %12 = vector.load %arg5[%c0_9, %c0_10] : memref<1x512xf32, #tpu.memory_space<vmem>>, vector<1x512xf32>
    %13 = vector.broadcast %12 : vector<1x512xf32> to vector<8x512xf32>
    %14 = arith.addf %11, %13 : vector<8x512xf32>
    %cst_11 = arith.constant 0.000000e+00 : f32
    %15 = vector.broadcast %cst_11 : f32 to vector<8x512xf32>
    %16 = arith.maximumf %14, %15 : vector<8x512xf32>
    %17 = arith.truncf %16 : vector<8x512xf32> to vector<8x512xbf16>
    %c0_12 = arith.constant 0 : index
    %c0_13 = arith.constant 0 : index
    %18 = vector.load %arg6[%c0_12, %c0_13] : memref<512x4xbf16, #tpu.memory_space<vmem>>, vector<512x4xbf16>
    %cst_14 = arith.constant dense<0.000000e+00> : vector<8x4xf32>
    %19 = tpu.matmul %17, %18, %cst_14 {dimension_numbers = #tpu.dot_dimension_numbers<[1], [0], [0], [1], [0, 0, 1, 1], [], []>} : vector<8x512xbf16>, vector<512x4xbf16>, vector<8x4xf32> -> vector<8x4xf32>
    %c0_15 = arith.constant 0 : index
    %c0_16 = arith.constant 0 : index
    %20 = vector.load %arg7[%c0_15, %c0_16] : memref<1x4xf32, #tpu.memory_space<vmem>>, vector<1x4xf32>
    %21 = vector.broadcast %20 : vector<1x4xf32> to vector<8x4xf32>
    %22 = arith.addf %19, %21 : vector<8x4xf32>
    %c0_17 = arith.constant 0 : index
    %c0_18 = arith.constant 0 : index
    %23 = vector.load %arg8[%c0_17, %c0_18] : memref<512x4xbf16, #tpu.memory_space<vmem>>, vector<512x4xbf16>
    %cst_19 = arith.constant dense<0.000000e+00> : vector<8x4xf32>
    %24 = tpu.matmul %17, %23, %cst_19 {dimension_numbers = #tpu.dot_dimension_numbers<[1], [0], [0], [1], [0, 0, 1, 1], [], []>} : vector<8x512xbf16>, vector<512x4xbf16>, vector<8x4xf32> -> vector<8x4xf32>
    %c0_20 = arith.constant 0 : index
    %c0_21 = arith.constant 0 : index
    %25 = vector.load %arg9[%c0_20, %c0_21] : memref<1x4xf32, #tpu.memory_space<vmem>>, vector<1x4xf32>
    %26 = vector.broadcast %25 : vector<1x4xf32> to vector<8x4xf32>
    %27 = arith.addf %24, %26 : vector<8x4xf32>
    %cst_22 = arith.constant 0.000000e+00 : f32
    %28 = vector.broadcast %cst_22 : f32 to vector<8x4xf32>
    %29 = arith.subf %28, %27 : vector<8x4xf32>
    %30 = math.exp %29 : vector<8x4xf32>
    %cst_23 = arith.constant 1.000000e+00 : f32
    %31 = vector.broadcast %cst_23 : f32 to vector<8x4xf32>
    %32 = arith.addf %31, %30 : vector<8x4xf32>
    %cst_24 = arith.constant 1.000000e+00 : f32
    %33 = vector.broadcast %cst_24 : f32 to vector<8x4xf32>
    %34 = arith.divf %33, %32 : vector<8x4xf32>
    %cst_25 = arith.constant 9.99999997E-7 : f32
    %cst_26 = arith.constant 1.000000e+00 : f32
    %35 = vector.broadcast %cst_25 : f32 to vector<8x4xf32>
    %36 = arith.maximumf %35, %34 : vector<8x4xf32>
    %37 = vector.broadcast %cst_26 : f32 to vector<8x4xf32>
    %38 = arith.minimumf %37, %36 : vector<8x4xf32>
    %c0_27 = arith.constant 0 : index
    %c0_28 = arith.constant 0 : index
    %39 = vector.load %arg10[%c0_27, %c0_28] : memref<8x4xf32, #tpu.memory_space<vmem>>, vector<8x4xf32>
    tpu.vector_store %arg10[%c0_27, %c0_28], %22 {strides = array<i32>} : memref<8x4xf32, #tpu.memory_space<vmem>>, vector<8x4xf32>,
    %c0_29 = arith.constant 0 : index
    %c0_30 = arith.constant 0 : index
    %40 = vector.load %arg11[%c0_29, %c0_30] : memref<8x4xf32, #tpu.memory_space<vmem>>, vector<8x4xf32>
    tpu.vector_store %arg11[%c0_29, %c0_30], %38 {strides = array<i32>} : memref<8x4xf32, #tpu.memory_space<vmem>>, vector<8x4xf32>,
    return
  }
  func.func @transform_0(%arg0: i32) -> (i32, i32) {
    %c0_i32 = arith.constant 0 : i32
    %c0_i32_0 = arith.constant 0 : i32
    return %arg0, %c0_i32 : i32, i32
  }
  func.func @transform_1(%arg0: i32) -> (i32, i32) {
    %c0_i32 = arith.constant 0 : i32
    %c0_i32_0 = arith.constant 0 : i32
    %c0_i32_1 = arith.constant 0 : i32
    return %c0_i32, %c0_i32_0 : i32, i32
  }
  func.func @transform_2(%arg0: i32) -> (i32, i32) {
    %c0_i32 = arith.constant 0 : i32
    %c0_i32_0 = arith.constant 0 : i32
    %c0_i32_1 = arith.constant 0 : i32
    return %c0_i32, %c0_i32_0 : i32, i32
  }
  func.func @transform_3(%arg0: i32) -> (i32, i32) {
    %c0_i32 = arith.constant 0 : i32
    %c0_i32_0 = arith.constant 0 : i32
    %c0_i32_1 = arith.constant 0 : i32
    return %c0_i32, %c0_i32_0 : i32, i32
  }
  func.func @transform_4(%arg0: i32) -> (i32, i32) {
    %c0_i32 = arith.constant 0 : i32
    %c0_i32_0 = arith.constant 0 : i32
    %c0_i32_1 = arith.constant 0 : i32
    return %c0_i32, %c0_i32_0 : i32, i32
  }
  func.func @transform_5(%arg0: i32) -> (i32, i32) {
    %c0_i32 = arith.constant 0 : i32
    %c0_i32_0 = arith.constant 0 : i32
    %c0_i32_1 = arith.constant 0 : i32
    return %c0_i32, %c0_i32_0 : i32, i32
  }
  func.func @transform_6(%arg0: i32) -> (i32, i32) {
    %c0_i32 = arith.constant 0 : i32
    %c0_i32_0 = arith.constant 0 : i32
    %c0_i32_1 = arith.constant 0 : i32
    return %c0_i32, %c0_i32_0 : i32, i32
  }
  func.func @transform_7(%arg0: i32) -> (i32, i32) {
    %c0_i32 = arith.constant 0 : i32
    %c0_i32_0 = arith.constant 0 : i32
    %c0_i32_1 = arith.constant 0 : i32
    return %c0_i32, %c0_i32_0 : i32, i32
  }
  func.func @transform_8(%arg0: i32) -> (i32, i32) {
    %c0_i32 = arith.constant 0 : i32
    %c0_i32_0 = arith.constant 0 : i32
    %c0_i32_1 = arith.constant 0 : i32
    return %c0_i32, %c0_i32_0 : i32, i32
  }
  func.func @transform_9(%arg0: i32) -> (i32, i32) {
    %c0_i32 = arith.constant 0 : i32
    %c0_i32_0 = arith.constant 0 : i32
    return %arg0, %c0_i32 : i32, i32
  }
  func.func @transform_10(%arg0: i32) -> (i32, i32) {
    %c0_i32 = arith.constant 0 : i32
    %c0_i32_0 = arith.constant 0 : i32
    return %arg0, %c0_i32 : i32, i32
  }
}

</mosaic_0001>

<llo_original>
// kernel: tpu_custom_call.1
$region0: #{tpu_custom_call.1}
  #allocation0 [shape = 'u32[]', space=smem, size = 0x4, offset = 0x4, fixed_abs, tag = 'smem constant byte address 0x4 - core index']
  #allocation1 [shape = 'u32[72,128]{1,0:T(1,128)}', space=vmem, size = 0x9000, scoped, tag = 'internal scratch']
  %s0 = inlined_call_operand.vmem [shape: f32[8,12], index: 0, kind: input, shape index: {}]
  %s1 = inlined_call_operand.vmem [shape: bf16[12,512], index: 1, kind: input, shape index: {}]
  %s2 = inlined_call_operand.vmem [shape: f32[1,512], index: 2, kind: input, shape index: {}]
  %s3 = inlined_call_operand.hbm [shape: bf16[512,512], index: 3, kind: input, shape index: {}]
  %s4 = inlined_call_operand.vmem [shape: f32[1,512], index: 4, kind: input, shape index: {}]
  %s5 = inlined_call_operand.vmem [shape: bf16[512,4], index: 5, kind: input, shape index: {}]
  %s6 = inlined_call_operand.vmem [shape: f32[1,4], index: 6, kind: input, shape index: {}]
  %s7 = inlined_call_operand.vmem [shape: bf16[512,4], index: 7, kind: input, shape index: {}]
  %s8 = inlined_call_operand.vmem [shape: f32[1,4], index: 8, kind: input, shape index: {}]
  %s9 = inlined_call_operand.vmem [shape: f32[8,4], index: 9, kind: output, shape index: {0}]
  %s10 = inlined_call_operand.vmem [shape: f32[8,4], index: 10, kind: output, shape index: {1}]
  %11 = xla_tuple %s9, %s10
  %s12 = sld [smem:[#allocation0]]
  $region58: #{tpu_custom_call.1} parent=0
    _
  %s14 = ssub.s32 1, %s12
  %s15 = scalar_select 0, %s14, %s12
  $region1: #{tpu_custom_call.1} parent=0
    #allocation2 [shape = 'u8[524288]{0}', space=vmem, size = 0x80000, scoped, tag = 'input window, operand 3, single buffered']
    #allocation3 [shape = 's32[1]{0}', space=sflag, size = 0x4, scoped, tag = 'scoped memory for tpu_custom_call.1']
    %16 = vsyncpa [#allocation3], 0
    // Predicated region
    $region2: #{tpu_custom_call.1} parent=1 // pred_check
      _
    $region3: #{tpu_custom_call.1} parent=1 // pred_check_branch
      %18 = sbr.rel (0) target = $region5
    $region4: #{tpu_custom_call.1} parent=1 // pred_region
      _
    $region5: #{tpu_custom_call.1} parent=1 // pred_fallthru
      _
    // Predicated region
    $region6: #{tpu_custom_call.1} parent=1 // pred_check
      _
    $region7: #{tpu_custom_call.1} parent=1 // pred_check_branch
      %20 = sbr.rel (0) target = $region9
    $region8: #{tpu_custom_call.1} parent=1 // pred_region
      _
    $region9: #{tpu_custom_call.1} parent=1 // pred_fallthru
      _
    // Predicated region
    $region10: #{tpu_custom_call.1} parent=1 // pred_check
      _
    $region11: #{tpu_custom_call.1} parent=1 // pred_check_branch
      %22 = sbr.rel (0) target = $region13
    $region12: #{tpu_custom_call.1} parent=1 // pred_region
      _
    $region13: #{tpu_custom_call.1} parent=1 // pred_fallthru
      _
    // Predicated region
    $region14: #{tpu_custom_call.1} parent=1 // pred_check
      _
    $region15: #{tpu_custom_call.1} parent=1 // pred_check_branch
      %24 = sbr.rel (0) target = $region17
    $region16: #{tpu_custom_call.1} parent=1 // pred_region
      %26 = vsyncadd [#allocation3], 0
      %s27 = sshll.u32 %s3, 4
      %s28 = int_to_ptr.hbm [resolvable:$true] %s27
      %s29 = sshll.u32 [#allocation2], 4
      %s30 = int_to_ptr.vmem [resolvable:$true] %s29
      %35 = dma.hbm_to_vmem [thread:$0]  %s28, 16384, %s30, [#allocation3], 256, 256, 16
    $region17: #{tpu_custom_call.1} parent=1 // pred_fallthru
      _
    // Predicated region
    $region18: #{tpu_custom_call.1} parent=1 // pred_check
      _
    $region19: #{tpu_custom_call.1} parent=1 // pred_check_branch
      %37 = sbr.rel (0) target = $region21
    $region20: #{tpu_custom_call.1} parent=1 // pred_region
      _
    $region21: #{tpu_custom_call.1} parent=1 // pred_fallthru
      _
    // Predicated region
    $region22: #{tpu_custom_call.1} parent=1 // pred_check
      _
    $region23: #{tpu_custom_call.1} parent=1 // pred_check_branch
      %39 = sbr.rel (0) target = $region25
    $region24: #{tpu_custom_call.1} parent=1 // pred_region
      _
    $region25: #{tpu_custom_call.1} parent=1 // pred_fallthru
      _
    // Predicated region
    $region26: #{tpu_custom_call.1} parent=1 // pred_check
      _
    $region27: #{tpu_custom_call.1} parent=1 // pred_check_branch
      %41 = sbr.rel (0) target = $region29
    $region28: #{tpu_custom_call.1} parent=1 // pred_region
      _
    $region29: #{tpu_custom_call.1} parent=1 // pred_fallthru
      _
    // Predicated region
    $region30: #{tpu_custom_call.1} parent=1 // pred_check
      _
    $region31: #{tpu_custom_call.1} parent=1 // pred_check_branch
      %43 = sbr.rel (0) target = $region33
    $region32: #{tpu_custom_call.1} parent=1 // pred_region
      _
    $region33: #{tpu_custom_call.1} parent=1 // pred_fallthru
      _
    // Predicated region
    $region34: #{tpu_custom_call.1} parent=1 // pred_check
      _
    $region35: #{tpu_custom_call.1} parent=1 // pred_check_branch
      %45 = sbr.rel (0) target = $region37
    $region36: #{tpu_custom_call.1} parent=1 // pred_region
      _
    $region37: #{tpu_custom_call.1} parent=1 // pred_fallthru
      _
    // Predicated region
    $region38: #{tpu_custom_call.1} parent=1 // pred_check
      _
    $region39: #{tpu_custom_call.1} parent=1 // pred_check_branch
      %47 = sbr.rel (0) target = $region41
    $region40: #{tpu_custom_call.1} parent=1 // pred_region
      %49 = dma.done [#allocation3], 16384
    $region41: #{tpu_custom_call.1} parent=1 // pred_fallthru
      _
    %v51 = vld [vmem:[%s0] sm:$0xff]
    %v52 = vpack.c.bf16 %v51, %v51
    %v53 = vld [vmem:[%s1] sm:$0xff]
    %v54 = vld [vmem:[%s1 + $0x8] sm:$0xff]
    %v55 = vld [vmem:[%s1 + $0x10] sm:$0x33]
    %v56 = vld [vmem:[%s1 + $0x18] sm:$0x33]
    %v57 = vld [vmem:[%s2] sm:$0xf]
    %v59 = vperm.slane %v57, 0
    %v60 = vperm.slane %v57, 1
    %v61 = vperm.slane %v57, 2
    %v62 = vperm.slane %v57, 3
    %v71 = vunpack.c.l.b16 %v53
    %v72 = vunpack.c.h.b16 %v53
    %v73 = vunpack.c.l.b16 %v54
    %v74 = vunpack.c.h.b16 %v54
    %v75 = vunpack.c.l.b16 %v55
    %v76 = vunpack.c.h.b16 %v55
    %v77 = vunpack.c.l.b16 %v56
    %v78 = vunpack.c.h.b16 %v56
    %v79 = vpack.c.b16 %v75, %v71
    %v80 = vpack.c.b16 %v76, %v72
    %v81 = vpack.c.b16 %v77, %v73
    %v82 = vpack.c.b16 %v78, %v74
    %vm83 = vcmask 97280
    %v85 = vsel %vm83, %v52, 0
    %vm87 = vcmask 1045504
    %v89 = vsel %vm87, %v79, 0
    %v92 = vsel %vm87, %v80, 0
    %v95 = vsel %vm87, %v81, 0
    %v98 = vsel %vm87, %v82, 0
    %100 = vmatpush.bf16.msra.mxu0 0
    %101 = vmatpush.bf16.msra.mxu0 0
    %102 = vmatpush.bf16.msra.mxu0 0
    %103 = vmatpush.bf16.msra.mxu0 0
    %104 = vmatpush.bf16.msra.mxu0 0
    %105 = vmatpush.bf16.msra.mxu0 0
    %106 = vmatpush.bf16.msra.mxu0 0
    %107 = vmatpush.bf16.msra.mxu0 %v89
    %108 = vmatmul.bf16.gmra.mxu0 %v85
    %v109 = vpop.f32.mrf.mxu0
    %v110 = vadd.f32 %v59, %v109
    %v111 = vpop.f32.mrf.mxu0
    %112 = vdwg.mxu0
    %113 = vmatpush.bf16.msra.mxu0 0
    %114 = vmatpush.bf16.msra.mxu0 0
    %115 = vmatpush.bf16.msra.mxu0 0
    %116 = vmatpush.bf16.msra.mxu0 0
    %117 = vmatpush.bf16.msra.mxu0 0
    %118 = vmatpush.bf16.msra.mxu0 0
    %119 = vmatpush.bf16.msra.mxu0 0
    %120 = vmatpush.bf16.msra.mxu0 %v92
    %121 = vmatmul.bf16.gmra.mxu0 %v85
    %v122 = vpop.f32.mrf.mxu0
    %v123 = vadd.f32 %v60, %v122
    %v124 = vpop.f32.mrf.mxu0
    %125 = vdwg.mxu0
    %126 = vmatpush.bf16.msra.mxu0 0
    %127 = vmatpush.bf16.msra.mxu0 0
    %128 = vmatpush.bf16.msra.mxu0 0
    %129 = vmatpush.bf16.msra.mxu0 0
    %130 = vmatpush.bf16.msra.mxu0 0
    %131 = vmatpush.bf16.msra.mxu0 0
    %132 = vmatpush.bf16.msra.mxu0 0
    %133 = vmatpush.bf16.msra.mxu0 %v95
    %134 = vmatmul.bf16.gmra.mxu0 %v85
    %v135 = vpop.f32.mrf.mxu0
    %v136 = vadd.f32 %v61, %v135
    %v137 = vpop.f32.mrf.mxu0
    %138 = vdwg.mxu0
    %139 = vmatpush.bf16.msra.mxu0 0
    %140 = vmatpush.bf16.msra.mxu0 0
    %141 = vmatpush.bf16.msra.mxu0 0
    %142 = vmatpush.bf16.msra.mxu0 0
    %143 = vmatpush.bf16.msra.mxu0 0
    %144 = vmatpush.bf16.msra.mxu0 0
    %145 = vmatpush.bf16.msra.mxu0 0
    %146 = vmatpush.bf16.msra.mxu0 %v98
    %147 = vmatmul.bf16.gmra.mxu0 %v85
    %v148 = vpop.f32.mrf.mxu0
    %v149 = vadd.f32 %v62, %v148
    %v150 = vpop.f32.mrf.mxu0
    %151 = vdwg.mxu0
    %v152 = vmax.f32 %v110, 0.0
    %v153 = vmax.f32 %v123, 0.0
    %v154 = vmax.f32 %v136, 0.0
    %v155 = vmax.f32 %v149, 0.0
    %v156 = vpack.c.bf16 %v152, %v152
    %v157 = vpack.c.bf16 %v153, %v153
    %v158 = vpack.c.bf16 %v154, %v154
    %v159 = vpack.c.bf16 %v155, %v155
    %v160 = vld [vmem:[#allocation2] sm:$0xff]
    %v161 = vld [vmem:[#allocation2 + $0x8] sm:$0xff]
    %v162 = vld [vmem:[#allocation2 + $0x10] sm:$0xff]
    %v163 = vld [vmem:[#allocation2 + $0x18] sm:$0xff]
    %v164 = vld [vmem:[#allocation2 + $0x20] sm:$0xff]
    %v165 = vld [vmem:[#allocation2 + $0x28] sm:$0xff]
    %v166 = vld [vmem:[#allocation2 + $0x30] sm:$0xff]
    %v167 = vld [vmem:[#allocation2 + $0x38] sm:$0xff]
    %v168 = vld [vmem:[#allocation2 + $0x40] sm:$0xff]
    %v169 = vld [vmem:[#allocation2 + $0x48] sm:$0xff]
    %v170 = vld [vmem:[#allocation2 + $0x50] sm:$0xff]
    %v171 = vld [vmem:[#allocation2 + $0x58] sm:$0xff]
    %v172 = vld [vmem:[#allocation2 + $0x60] sm:$0xff]
    %v173 = vld [vmem:[#allocation2 + $0x68] sm:$0xff]
    %v174 = vld [vmem:[#allocation2 + $0x70] sm:$0xff]
    %v175 = vld [vmem:[#allocation2 + $0x78] sm:$0xff]
    %v176 = vld [vmem:[#allocation2 + $0x80] sm:$0xff]
    %v177 = vld [vmem:[#allocation2 + $0x88] sm:$0xff]
    %v178 = vld [vmem:[#allocation2 + $0x90] sm:$0xff]
    %v179 = vld [vmem:[#allocation2 + $0x98] sm:$0xff]
    %v180 = vld [vmem:[#allocation2 + $0xa0] sm:$0xff]
    %v181 = vld [vmem:[#allocation2 + $0xa8] sm:$0xff]
    %v182 = vld [vmem:[#allocation2 + $0xb0] sm:$0xff]
    %v183 = vld [vmem:[#allocation2 + $0xb8] sm:$0xff]
    %v184 = vld [vmem:[#allocation2 + $0xc0] sm:$0xff]
    %v185 = vld [vmem:[#allocation2 + $0xc8] sm:$0xff]
    %v186 = vld [vmem:[#allocation2 + $0xd0] sm:$0xff]
    %v187 = vld [vmem:[#allocation2 + $0xd8] sm:$0xff]
    %v188 = vld [vmem:[#allocation2 + $0xe0] sm:$0xff]
    %v189 = vld [vmem:[#allocation2 + $0xe8] sm:$0xff]
    %v190 = vld [vmem:[#allocation2 + $0xf0] sm:$0xff]
    %v191 = vld [vmem:[#allocation2 + $0xf8] sm:$0xff]
    %v192 = vld [vmem:[#allocation2 + $0x100] sm:$0xff]
    %v193 = vld [vmem:[#allocation2 + $0x108] sm:$0xff]
    %v194 = vld [vmem:[#allocation2 + $0x110] sm:$0xff]
    %v195 = vld [vmem:[#allocation2 + $0x118] sm:$0xff]
    %v196 = vld [vmem:[#allocation2 + $0x120] sm:$0xff]
    %v197 = vld [vmem:[#allocation2 + $0x128] sm:$0xff]
    %v198 = vld [vmem:[#allocation2 + $0x130] sm:$0xff]
    %v199 = vld [vmem:[#allocation2 + $0x138] sm:$0xff]
    %v200 = vld [vmem:[#allocation2 + $0x140] sm:$0xff]
    %v201 = vld [vmem:[#allocation2 + $0x148] sm:$0xff]
    %v202 = vld [vmem:[#allocation2 + $0x150] sm:$0xff]
    %v203 = vld [vmem:[#allocation2 + $0x158] sm:$0xff]
    %v204 = vld [vmem:[#allocation2 + $0x160] sm:$0xff]
    %v205 = vld [vmem:[#allocation2 + $0x168] sm:$0xff]
    %v206 = vld [vmem:[#allocation2 + $0x170] sm:$0xff]
    %v207 = vld [vmem:[#allocation2 + $0x178] sm:$0xff]
    %v208 = vld [vmem:[#allocation2 + $0x180] sm:$0xff]
    %v209 = vld [vmem:[#allocation2 + $0x188] sm:$0xff]
    %v210 = vld [vmem:[#allocation2 + $0x190] sm:$0xff]
    %v211 = vld [vmem:[#allocation2 + $0x198] sm:$0xff]
    %v212 = vld [vmem:[#allocation2 + $0x1a0] sm:$0xff]
    %v213 = vld [vmem:[#allocation2 + $0x1a8] sm:$0xff]
    %v214 = vld [vmem:[#allocation2 + $0x1b0] sm:$0xff]
    %v215 = vld [vmem:[#allocation2 + $0x1b8] sm:$0xff]
    %v216 = vld [vmem:[#allocation2 + $0x1c0] sm:$0xff]
    %v217 = vld [vmem:[#allocation2 + $0x1c8] sm:$0xff]
    %v218 = vld [vmem:[#allocation2 + $0x1d0] sm:$0xff]
    %v219 = vld [vmem:[#allocation2 + $0x1d8] sm:$0xff]
    %v220 = vld [vmem:[#allocation2 + $0x1e0] sm:$0xff]
    %v221 = vld [vmem:[#allocation2 + $0x1e8] sm:$0xff]
    %v222 = vld [vmem:[#allocation2 + $0x1f0] sm:$0xff]
    %v223 = vld [vmem:[#allocation2 + $0x1f8] sm:$0xff]
    %v224 = vld [vmem:[#allocation2 + $0x200] sm:$0xff]
    %v225 = vld [vmem:[#allocation2 + $0x208] sm:$0xff]
    %v226 = vld [vmem:[#allocation2 + $0x210] sm:$0xff]
    %v227 = vld [vmem:[#allocation2 + $0x218] sm:$0xff]
    %v228 = vld [vmem:[#allocation2 + $0x220] sm:$0xff]
    %v229 = vld [vmem:[#allocation2 + $0x228] sm:$0xff]
    %v230 = vld [vmem:[#allocation2 + $0x230] sm:$0xff]
    %v231 = vld [vmem:[#allocation2 + $0x238] sm:$0xff]
    %v232 = vld [vmem:[#allocation2 + $0x240] sm:$0xff]
    %v233 = vld [vmem:[#allocation2 + $0x248] sm:$0xff]
    %v234 = vld [vmem:[#allocation2 + $0x250] sm:$0xff]
    %v235 = vld [vmem:[#allocation2 + $0x258] sm:$0xff]
    %v236 = vld [vmem:[#allocation2 + $0x260] sm:$0xff]
    %v237 = vld [vmem:[#allocation2 + $0x268] sm:$0xff]
    %v238 = vld [vmem:[#allocation2 + $0x270] sm:$0xff]
    %v239 = vld [vmem:[#allocation2 + $0x278] sm:$0xff]
    %v240 = vld [vmem:[#allocation2 + $0x280] sm:$0xff]
    %v241 = vld [vmem:[#allocation2 + $0x288] sm:$0xff]
    %v242 = vld [vmem:[#allocation2 + $0x290] sm:$0xff]
    %v243 = vld [vmem:[#allocation2 + $0x298] sm:$0xff]
    %v244 = vld [vmem:[#allocation2 + $0x2a0] sm:$0xff]
    %v245 = vld [vmem:[#allocation2 + $0x2a8] sm:$0xff]
    %v246 = vld [vmem:[#allocation2 + $0x2b0] sm:$0xff]
    %v247 = vld [vmem:[#allocation2 + $0x2b8] sm:$0xff]
    %v248 = vld [vmem:[#allocation2 + $0x2c0] sm:$0xff]
    %v249 = vld [vmem:[#allocation2 + $0x2c8] sm:$0xff]
    %v250 = vld [vmem:[#allocation2 + $0x2d0] sm:$0xff]
    %v251 = vld [vmem:[#allocation2 + $0x2d8] sm:$0xff]
    %v252 = vld [vmem:[#allocation2 + $0x2e0] sm:$0xff]
    %v253 = vld [vmem:[#allocation2 + $0x2e8] sm:$0xff]
    %v254 = vld [vmem:[#allocation2 + $0x2f0] sm:$0xff]
    %v255 = vld [vmem:[#allocation2 + $0x2f8] sm:$0xff]
    %v256 = vld [vmem:[#allocation2 + $0x300] sm:$0xff]
    %v257 = vld [vmem:[#allocation2 + $0x308] sm:$0xff]
    %v258 = vld [vmem:[#allocation2 + $0x310] sm:$0xff]
    %v259 = vld [vmem:[#allocation2 + $0x318] sm:$0xff]
    %v260 = vld [vmem:[#allocation2 + $0x320] sm:$0xff]
    %v261 = vld [vmem:[#allocation2 + $0x328] sm:$0xff]
    %v262 = vld [vmem:[#allocation2 + $0x330] sm:$0xff]
    %v263 = vld [vmem:[#allocation2 + $0x338] sm:$0xff]
    %v264 = vld [vmem:[#allocation2 + $0x340] sm:$0xff]
    %v265 = vld [vmem:[#allocation2 + $0x348] sm:$0xff]
    %v266 = vld [vmem:[#allocation2 + $0x350] sm:$0xff]
    %v267 = vld [vmem:[#allocation2 + $0x358] sm:$0xff]
    %v268 = vld [vmem:[#allocation2 + $0x360] sm:$0xff]
    %v269 = vld [vmem:[#allocation2 + $0x368] sm:$0xff]
    %v270 = vld [vmem:[#allocation2 + $0x370] sm:$0xff]
    %v271 = vld [vmem:[#allocation2 + $0x378] sm:$0xff]
    %v272 = vld [vmem:[#allocation2 + $0x380] sm:$0xff]
    %v273 = vld [vmem:[#allocation2 + $0x388] sm:$0xff]
    %v274 = vld [vmem:[#allocation2 + $0x390] sm:$0xff]
    %v275 = vld [vmem:[#allocation2 + $0x398] sm:$0xff]
    %v276 = vld [vmem:[#allocation2 + $0x3a0] sm:$0xff]
    %v277 = vld [vmem:[#allocation2 + $0x3a8] sm:$0xff]
    %v278 = vld [vmem:[#allocation2 + $0x3b0] sm:$0xff]
    %v279 = vld [vmem:[#allocation2 + $0x3b8] sm:$0xff]
    %v280 = vld [vmem:[#allocation2 + $0x3c0] sm:$0xff]
    %v281 = vld [vmem:[#allocation2 + $0x3c8] sm:$0xff]
    %v282 = vld [vmem:[#allocation2 + $0x3d0] sm:$0xff]
    %v283 = vld [vmem:[#allocation2 + $0x3d8] sm:$0xff]
    %v284 = vld [vmem:[#allocation2 + $0x3e0] sm:$0xff]
    %v285 = vld [vmem:[#allocation2 + $0x3e8] sm:$0xff]
    %v286 = vld [vmem:[#allocation2 + $0x3f0] sm:$0xff]
    %v287 = vld [vmem:[#allocation2 + $0x3f8] sm:$0xff]
    %v288 = vld [vmem:[%s4] sm:$0xf]
    %v290 = vperm.slane %v288, 0
    %v291 = vperm.slane %v288, 1
    %v292 = vperm.slane %v288, 2
    %v293 = vperm.slane %v288, 3
    %v426 = vunpack.c.l.b16 %v160
    %v427 = vunpack.c.h.b16 %v160
    %v428 = vunpack.c.l.b16 %v161
    %v429 = vunpack.c.h.b16 %v161
    %v430 = vunpack.c.l.b16 %v162
    %v431 = vunpack.c.h.b16 %v162
    %v432 = vunpack.c.l.b16 %v163
    %v433 = vunpack.c.h.b16 %v163
    %v434 = vunpack.c.l.b16 %v164
    %v435 = vunpack.c.h.b16 %v164
    %v436 = vunpack.c.l.b16 %v165
    %v437 = vunpack.c.h.b16 %v165
    %v438 = vunpack.c.l.b16 %v166
    %v439 = vunpack.c.h.b16 %v166
    %v440 = vunpack.c.l.b16 %v167
    %v441 = vunpack.c.h.b16 %v167
    %v442 = vunpack.c.l.b16 %v168
    %v443 = vunpack.c.h.b16 %v168
    %v444 = vunpack.c.l.b16 %v169
    %v445 = vunpack.c.h.b16 %v169
    %v446 = vunpack.c.l.b16 %v170
    %v447 = vunpack.c.h.b16 %v170
    %v448 = vunpack.c.l.b16 %v171
    %v449 = vunpack.c.h.b16 %v171
    %v450 = vunpack.c.l.b16 %v172
    %v451 = vunpack.c.h.b16 %v172
    %v452 = vunpack.c.l.b16 %v173
    %v453 = vunpack.c.h.b16 %v173
    %v454 = vunpack.c.l.b16 %v174
    %v455 = vunpack.c.h.b16 %v174
    %v456 = vunpack.c.l.b16 %v175
    %v457 = vunpack.c.h.b16 %v175
    %v458 = vunpack.c.l.b16 %v176
    %v459 = vunpack.c.h.b16 %v176
    %v460 = vunpack.c.l.b16 %v177
    %v461 = vunpack.c.h.b16 %v177
    %v462 = vunpack.c.l.b16 %v178
    %v463 = vunpack.c.h.b16 %v178
    %v464 = vunpack.c.l.b16 %v179
    %v465 = vunpack.c.h.b16 %v179
    %v466 = vunpack.c.l.b16 %v180
    %v467 = vunpack.c.h.b16 %v180
    %v468 = vunpack.c.l.b16 %v181
    %v469 = vunpack.c.h.b16 %v181
    %v470 = vunpack.c.l.b16 %v182
    %v471 = vunpack.c.h.b16 %v182
    %v472 = vunpack.c.l.b16 %v183
    %v473 = vunpack.c.h.b16 %v183
    %v474 = vunpack.c.l.b16 %v184
    %v475 = vunpack.c.h.b16 %v184
    %v476 = vunpack.c.l.b16 %v185
    %v477 = vunpack.c.h.b16 %v185
    %v478 = vunpack.c.l.b16 %v186
    %v479 = vunpack.c.h.b16 %v186
    %v480 = vunpack.c.l.b16 %v187
    %v481 = vunpack.c.h.b16 %v187
    %v482 = vunpack.c.l.b16 %v188
    %v483 = vunpack.c.h.b16 %v188
    %v484 = vunpack.c.l.b16 %v189
    %v485 = vunpack.c.h.b16 %v189
    %v486 = vunpack.c.l.b16 %v190
    %v487 = vunpack.c.h.b16 %v190
    %v488 = vunpack.c.l.b16 %v191
    %v489 = vunpack.c.h.b16 %v191
    %v490 = vunpack.c.l.b16 %v192
    %v491 = vunpack.c.h.b16 %v192
    %v492 = vunpack.c.l.b16 %v193
    %v493 = vunpack.c.h.b16 %v193
    %v494 = vunpack.c.l.b16 %v194
    %v495 = vunpack.c.h.b16 %v194
    %v496 = vunpack.c.l.b16 %v195
    %v497 = vunpack.c.h.b16 %v195
    %v498 = vunpack.c.l.b16 %v196
    %v499 = vunpack.c.h.b16 %v196
    %v500 = vunpack.c.l.b16 %v197
    %v501 = vunpack.c.h.b16 %v197
    %v502 = vunpack.c.l.b16 %v198
    %v503 = vunpack.c.h.b16 %v198
    %v504 = vunpack.c.l.b16 %v199
    %v505 = vunpack.c.h.b16 %v199
    %v506 = vunpack.c.l.b16 %v200
    %v507 = vunpack.c.h.b16 %v200
    %v508 = vunpack.c.l.b16 %v201
    %v509 = vunpack.c.h.b16 %v201
    %v510 = vunpack.c.l.b16 %v202
    %v511 = vunpack.c.h.b16 %v202
    %v512 = vunpack.c.l.b16 %v203
    %v513 = vunpack.c.h.b16 %v203
    %v514 = vunpack.c.l.b16 %v204
    %v515 = vunpack.c.h.b16 %v204
    %v516 = vunpack.c.l.b16 %v205
    %v517 = vunpack.c.h.b16 %v205
    %v518 = vunpack.c.l.b16 %v206
    %v519 = vunpack.c.h.b16 %v206
    %v520 = vunpack.c.l.b16 %v207
    %v521 = vunpack.c.h.b16 %v207
    %v522 = vunpack.c.l.b16 %v208
    %v523 = vunpack.c.h.b16 %v208
    %v524 = vunpack.c.l.b16 %v209
    %v525 = vunpack.c.h.b16 %v209
    %v526 = vunpack.c.l.b16 %v210
    %v527 = vunpack.c.h.b16 %v210
    %v528 = vunpack.c.l.b16 %v211
    %v529 = vunpack.c.h.b16 %v211
    %v530 = vunpack.c.l.b16 %v212
    %v531 = vunpack.c.h.b16 %v212
    %v532 = vunpack.c.l.b16 %v213
    %v533 = vunpack.c.h.b16 %v213
    %v534 = vunpack.c.l.b16 %v214
    %v535 = vunpack.c.h.b16 %v214
    %v536 = vunpack.c.l.b16 %v215
    %v537 = vunpack.c.h.b16 %v215
    %v538 = vunpack.c.l.b16 %v216
    %v539 = vunpack.c.h.b16 %v216
    %v540 = vunpack.c.l.b16 %v217
    %v541 = vunpack.c.h.b16 %v217
    %v542 = vunpack.c.l.b16 %v218
    %v543 = vunpack.c.h.b16 %v218
    %v544 = vunpack.c.l.b16 %v219
    %v545 = vunpack.c.h.b16 %v219
    %v546 = vunpack.c.l.b16 %v220
    %v547 = vunpack.c.h.b16 %v220
    %v548 = vunpack.c.l.b16 %v221
    %v549 = vunpack.c.h.b16 %v221
    %v550 = vunpack.c.l.b16 %v222
    %v551 = vunpack.c.h.b16 %v222
    %v552 = vunpack.c.l.b16 %v223
    %v553 = vunpack.c.h.b16 %v223
    %v554 = vunpack.c.l.b16 %v224
    %v555 = vunpack.c.h.b16 %v224
    %v556 = vunpack.c.l.b16 %v225
    %v557 = vunpack.c.h.b16 %v225
    %v558 = vunpack.c.l.b16 %v226
    %v559 = vunpack.c.h.b16 %v226
    %v560 = vunpack.c.l.b16 %v227
    %v561 = vunpack.c.h.b16 %v227
    %v562 = vunpack.c.l.b16 %v228
    %v563 = vunpack.c.h.b16 %v228
    %v564 = vunpack.c.l.b16 %v229
    %v565 = vunpack.c.h.b16 %v229
    %v566 = vunpack.c.l.b16 %v230
    %v567 = vunpack.c.h.b16 %v230
    %v568 = vunpack.c.l.b16 %v231
    %v569 = vunpack.c.h.b16 %v231
    %v570 = vunpack.c.l.b16 %v232
    %v571 = vunpack.c.h.b16 %v232
    %v572 = vunpack.c.l.b16 %v233
    %v573 = vunpack.c.h.b16 %v233
    %v574 = vunpack.c.l.b16 %v234
    %v575 = vunpack.c.h.b16 %v234
    %v576 = vunpack.c.l.b16 %v235
    %v577 = vunpack.c.h.b16 %v235
    %v578 = vunpack.c.l.b16 %v236
    %v579 = vunpack.c.h.b16 %v236
    %v580 = vunpack.c.l.b16 %v237
    %v581 = vunpack.c.h.b16 %v237
    %v582 = vunpack.c.l.b16 %v238
    %v583 = vunpack.c.h.b16 %v238
    %v584 = vunpack.c.l.b16 %v239
    %v585 = vunpack.c.h.b16 %v239
    %v586 = vunpack.c.l.b16 %v240
    %v587 = vunpack.c.h.b16 %v240
    %v588 = vunpack.c.l.b16 %v241
    %v589 = vunpack.c.h.b16 %v241
    %v590 = vunpack.c.l.b16 %v242
    %v591 = vunpack.c.h.b16 %v242
    %v592 = vunpack.c.l.b16 %v243
    %v593 = vunpack.c.h.b16 %v243
    %v594 = vunpack.c.l.b16 %v244
    %v595 = vunpack.c.h.b16 %v244
    %v596 = vunpack.c.l.b16 %v245
    %v597 = vunpack.c.h.b16 %v245
    %v598 = vunpack.c.l.b16 %v246
    %v599 = vunpack.c.h.b16 %v246
    %v600 = vunpack.c.l.b16 %v247
    %v601 = vunpack.c.h.b16 %v247
    %v602 = vunpack.c.l.b16 %v248
    %v603 = vunpack.c.h.b16 %v248
    %v604 = vunpack.c.l.b16 %v249
    %v605 = vunpack.c.h.b16 %v249
    %v606 = vunpack.c.l.b16 %v250
    %v607 = vunpack.c.h.b16 %v250
    %v608 = vunpack.c.l.b16 %v251
    %v609 = vunpack.c.h.b16 %v251
    %v610 = vunpack.c.l.b16 %v252
    %v611 = vunpack.c.h.b16 %v252
    %v612 = vunpack.c.l.b16 %v253
    %v613 = vunpack.c.h.b16 %v253
    %v614 = vunpack.c.l.b16 %v254
    %v615 = vunpack.c.h.b16 %v254
    %v616 = vunpack.c.l.b16 %v255
    %v617 = vunpack.c.h.b16 %v255
    %v618 = vunpack.c.l.b16 %v256
    %v619 = vunpack.c.h.b16 %v256
    %v620 = vunpack.c.l.b16 %v257
    %v621 = vunpack.c.h.b16 %v257
    %v622 = vunpack.c.l.b16 %v258
    %v623 = vunpack.c.h.b16 %v258
    %v624 = vunpack.c.l.b16 %v259
    %v625 = vunpack.c.h.b16 %v259
    %v626 = vunpack.c.l.b16 %v260
    %v627 = vunpack.c.h.b16 %v260
    %v628 = vunpack.c.l.b16 %v261
    %v629 = vunpack.c.h.b16 %v261
    %v630 = vunpack.c.l.b16 %v262
    %v631 = vunpack.c.h.b16 %v262
    %v632 = vunpack.c.l.b16 %v263
    %v633 = vunpack.c.h.b16 %v263
    %v634 = vunpack.c.l.b16 %v264
    %v635 = vunpack.c.h.b16 %v264
    %v636 = vunpack.c.l.b16 %v265
    %v637 = vunpack.c.h.b16 %v265
    %v638 = vunpack.c.l.b16 %v266
    %v639 = vunpack.c.h.b16 %v266
    %v640 = vunpack.c.l.b16 %v267
    %v641 = vunpack.c.h.b16 %v267
    %v642 = vunpack.c.l.b16 %v268
    %v643 = vunpack.c.h.b16 %v268
    %v644 = vunpack.c.l.b16 %v269
    %v645 = vunpack.c.h.b16 %v269
    %v646 = vunpack.c.l.b16 %v270
    %v647 = vunpack.c.h.b16 %v270
    %v648 = vunpack.c.l.b16 %v271
    %v649 = vunpack.c.h.b16 %v271
    %v650 = vunpack.c.l.b16 %v272
    %v651 = vunpack.c.h.b16 %v272
    %v652 = vunpack.c.l.b16 %v273
    %v653 = vunpack.c.h.b16 %v273
    %v654 = vunpack.c.l.b16 %v274
    %v655 = vunpack.c.h.b16 %v274
    %v656 = vunpack.c.l.b16 %v275
    %v657 = vunpack.c.h.b16 %v275
    %v658 = vunpack.c.l.b16 %v276
    %v659 = vunpack.c.h.b16 %v276
    %v660 = vunpack.c.l.b16 %v277
    %v661 = vunpack.c.h.b16 %v277
    %v662 = vunpack.c.l.b16 %v278
    %v663 = vunpack.c.h.b16 %v278
    %v664 = vunpack.c.l.b16 %v279
    %v665 = vunpack.c.h.b16 %v279
    %v666 = vunpack.c.l.b16 %v280
    %v667 = vunpack.c.h.b16 %v280
    %v668 = vunpack.c.l.b16 %v281
    %v669 = vunpack.c.h.b16 %v281
    %v670 = vunpack.c.l.b16 %v282
    %v671 = vunpack.c.h.b16 %v282
    %v672 = vunpack.c.l.b16 %v283
    %v673 = vunpack.c.h.b16 %v283
    %v674 = vunpack.c.l.b16 %v284
    %v675 = vunpack.c.h.b16 %v284
    %v676 = vunpack.c.l.b16 %v285
    %v677 = vunpack.c.h.b16 %v285
    %v678 = vunpack.c.l.b16 %v286
    %v679 = vunpack.c.h.b16 %v286
    %v680 = vunpack.c.l.b16 %v287
    %v681 = vunpack.c.h.b16 %v287
    %v682 = vpack.c.b16 %v430, %v426
    %v683 = vpack.c.b16 %v431, %v427
    %v684 = vpack.c.b16 %v432, %v428
    %v685 = vpack.c.b16 %v433, %v429
    %v686 = vpack.c.b16 %v438, %v434
    %v687 = vpack.c.b16 %v439, %v435
    %v688 = vpack.c.b16 %v440, %v436
    %v689 = vpack.c.b16 %v441, %v437
    %v690 = vpack.c.b16 %v446, %v442
    %v691 = vpack.c.b16 %v447, %v443
    %v692 = vpack.c.b16 %v448, %v444
    %v693 = vpack.c.b16 %v449, %v445
    %v694 = vpack.c.b16 %v454, %v450
    %v695 = vpack.c.b16 %v455, %v451
    %v696 = vpack.c.b16 %v456, %v452
    %v697 = vpack.c.b16 %v457, %v453
    %v698 = vpack.c.b16 %v462, %v458
    %v699 = vpack.c.b16 %v463, %v459
    %v700 = vpack.c.b16 %v464, %v460
    %v701 = vpack.c.b16 %v465, %v461
    %v702 = vpack.c.b16 %v470, %v466
    %v703 = vpack.c.b16 %v471, %v467
    %v704 = vpack.c.b16 %v472, %v468
    %v705 = vpack.c.b16 %v473, %v469
    %v706 = vpack.c.b16 %v478, %v474
    %v707 = vpack.c.b16 %v479, %v475
    %v708 = vpack.c.b16 %v480, %v476
    %v709 = vpack.c.b16 %v481, %v477
    %v710 = vpack.c.b16 %v486, %v482
    %v711 = vpack.c.b16 %v487, %v483
    %v712 = vpack.c.b16 %v488, %v484
    %v713 = vpack.c.b16 %v489, %v485
    %v714 = vpack.c.b16 %v494, %v490
    %v715 = vpack.c.b16 %v495, %v491
    %v716 = vpack.c.b16 %v496, %v492
    %v717 = vpack.c.b16 %v497, %v493
    %v718 = vpack.c.b16 %v502, %v498
    %v719 = vpack.c.b16 %v503, %v499
    %v720 = vpack.c.b16 %v504, %v500
    %v721 = vpack.c.b16 %v505, %v501
    %v722 = vpack.c.b16 %v510, %v506
    %v723 = vpack.c.b16 %v511, %v507
    %v724 = vpack.c.b16 %v512, %v508
    %v725 = vpack.c.b16 %v513, %v509
    %v726 = vpack.c.b16 %v518, %v514
    %v727 = vpack.c.b16 %v519, %v515
    %v728 = vpack.c.b16 %v520, %v516
    %v729 = vpack.c.b16 %v521, %v517
    %v730 = vpack.c.b16 %v526, %v522
    %v731 = vpack.c.b16 %v527, %v523
    %v732 = vpack.c.b16 %v528, %v524
    %v733 = vpack.c.b16 %v529, %v525
    %v734 = vpack.c.b16 %v534, %v530
    %v735 = vpack.c.b16 %v535, %v531
    %v736 = vpack.c.b16 %v536, %v532
    %v737 = vpack.c.b16 %v537, %v533
    %v738 = vpack.c.b16 %v542, %v538
    %v739 = vpack.c.b16 %v543, %v539
    %v740 = vpack.c.b16 %v544, %v540
    %v741 = vpack.c.b16 %v545, %v541
    %v742 = vpack.c.b16 %v550, %v546
    %v743 = vpack.c.b16 %v551, %v547
    %v744 = vpack.c.b16 %v552, %v548
    %v745 = vpack.c.b16 %v553, %v549
    %v746 = vpack.c.b16 %v558, %v554
    %v747 = vpack.c.b16 %v559, %v555
    %v748 = vpack.c.b16 %v560, %v556
    %v749 = vpack.c.b16 %v561, %v557
    %v750 = vpack.c.b16 %v566, %v562
    %v751 = vpack.c.b16 %v567, %v563
    %v752 = vpack.c.b16 %v568, %v564
    %v753 = vpack.c.b16 %v569, %v565
    %v754 = vpack.c.b16 %v574, %v570
    %v755 = vpack.c.b16 %v575, %v571
    %v756 = vpack.c.b16 %v576, %v572
    %v757 = vpack.c.b16 %v577, %v573
    %v758 = vpack.c.b16 %v582, %v578
    %v759 = vpack.c.b16 %v583, %v579
    %v760 = vpack.c.b16 %v584, %v580
    %v761 = vpack.c.b16 %v585, %v581
    %v762 = vpack.c.b16 %v590, %v586
    %v763 = vpack.c.b16 %v591, %v587
    %v764 = vpack.c.b16 %v592, %v588
    %v765 = vpack.c.b16 %v593, %v589
    %v766 = vpack.c.b16 %v598, %v594
    %v767 = vpack.c.b16 %v599, %v595
    %v768 = vpack.c.b16 %v600, %v596
    %v769 = vpack.c.b16 %v601, %v597
    %v770 = vpack.c.b16 %v606, %v602
    %v771 = vpack.c.b16 %v607, %v603
    %v772 = vpack.c.b16 %v608, %v604
    %v773 = vpack.c.b16 %v609, %v605
    %v774 = vpack.c.b16 %v614, %v610
    %v775 = vpack.c.b16 %v615, %v611
    %v776 = vpack.c.b16 %v616, %v612
    %v777 = vpack.c.b16 %v617, %v613
    %v778 = vpack.c.b16 %v622, %v618
    %v779 = vpack.c.b16 %v623, %v619
    %v780 = vpack.c.b16 %v624, %v620
    %v781 = vpack.c.b16 %v625, %v621
    %v782 = vpack.c.b16 %v630, %v626
    %v783 = vpack.c.b16 %v631, %v627
    %v784 = vpack.c.b16 %v632, %v628
    %v785 = vpack.c.b16 %v633, %v629
    %v786 = vpack.c.b16 %v638, %v634
    %v787 = vpack.c.b16 %v639, %v635
    %v788 = vpack.c.b16 %v640, %v636
    %v789 = vpack.c.b16 %v641, %v637
    %v790 = vpack.c.b16 %v646, %v642
    %v791 = vpack.c.b16 %v647, %v643
    %v792 = vpack.c.b16 %v648, %v644
    %v793 = vpack.c.b16 %v649, %v645
    %v794 = vpack.c.b16 %v654, %v650
    %v795 = vpack.c.b16 %v655, %v651
    %v796 = vpack.c.b16 %v656, %v652
    %v797 = vpack.c.b16 %v657, %v653
    %v798 = vpack.c.b16 %v662, %v658
    %v799 = vpack.c.b16 %v663, %v659
    %v800 = vpack.c.b16 %v664, %v660
    %v801 = vpack.c.b16 %v665, %v661
    %v802 = vpack.c.b16 %v670, %v666
    %v803 = vpack.c.b16 %v671, %v667
    %v804 = vpack.c.b16 %v672, %v668
    %v805 = vpack.c.b16 %v673, %v669
    %v806 = vpack.c.b16 %v678, %v674
    %v807 = vpack.c.b16 %v679, %v675
    %v808 = vpack.c.b16 %v680, %v676
    %v809 = vpack.c.b16 %v681, %v677
    %938 = vmatpush.bf16.msra.mxu0 %v710
    %939 = vmatpush.bf16.msra.mxu0 %v706
    %940 = vmatpush.bf16.msra.mxu0 %v702
    %941 = vmatpush.bf16.msra.mxu0 %v698
    %942 = vmatpush.bf16.msra.mxu0 %v694
    %943 = vmatpush.bf16.msra.mxu0 %v690
    %944 = vmatpush.bf16.msra.mxu0 %v686
    %945 = vmatpush.bf16.msra.mxu0 %v682
    %946 = vmatmul.bf16.gmra.mxu0 %v156
    %v947 = vpop.f32.mrf.mxu0
    %v948 = vadd.f32 %v290, %v947
    %v949 = vpop.f32.mrf.mxu0
    %950 = vdwg.mxu0
    %951 = vmatpush.bf16.msra.mxu0 %v742
    %952 = vmatpush.bf16.msra.mxu0 %v738
    %953 = vmatpush.bf16.msra.mxu0 %v734
    %954 = vmatpush.bf16.msra.mxu0 %v730
    %955 = vmatpush.bf16.msra.mxu0 %v726
    %956 = vmatpush.bf16.msra.mxu0 %v722
    %957 = vmatpush.bf16.msra.mxu0 %v718
    %958 = vmatpush.bf16.msra.mxu0 %v714
    %959 = vmatmul.bf16.gmra.mxu0 %v157
    %v960 = vpop.f32.mrf.mxu0
    %v961 = vadd.f32 %v948, %v960
    %v962 = vpop.f32.mrf.mxu0
    %963 = vdwg.mxu0
    %964 = vmatpush.bf16.msra.mxu0 %v774
    %965 = vmatpush.bf16.msra.mxu0 %v770
    %966 = vmatpush.bf16.msra.mxu0 %v766
    %967 = vmatpush.bf16.msra.mxu0 %v762
    %968 = vmatpush.bf16.msra.mxu0 %v758
    %969 = vmatpush.bf16.msra.mxu0 %v754
    %970 = vmatpush.bf16.msra.mxu0 %v750
    %971 = vmatpush.bf16.msra.mxu0 %v746
    %972 = vmatmul.bf16.gmra.mxu0 %v158
    %v973 = vpop.f32.mrf.mxu0
    %v974 = vadd.f32 %v961, %v973
    %v975 = vpop.f32.mrf.mxu0
    %976 = vdwg.mxu0
    %977 = vmatpush.bf16.msra.mxu0 %v806
    %978 = vmatpush.bf16.msra.mxu0 %v802
    %979 = vmatpush.bf16.msra.mxu0 %v798
    %980 = vmatpush.bf16.msra.mxu0 %v794
    %981 = vmatpush.bf16.msra.mxu0 %v790
    %982 = vmatpush.bf16.msra.mxu0 %v786
    %983 = vmatpush.bf16.msra.mxu0 %v782
    %984 = vmatpush.bf16.msra.mxu0 %v778
    %985 = vmatmul.bf16.gmra.mxu0 %v159
    %v986 = vpop.f32.mrf.mxu0
    %v987 = vadd.f32 %v974, %v986
    %v988 = vpop.f32.mrf.mxu0
    %989 = vdwg.mxu0
    %990 = vmatpush.bf16.msra.mxu0 %v711
    %991 = vmatpush.bf16.msra.mxu0 %v707
    %992 = vmatpush.bf16.msra.mxu0 %v703
    %993 = vmatpush.bf16.msra.mxu0 %v699
    %994 = vmatpush.bf16.msra.mxu0 %v695
    %995 = vmatpush.bf16.msra.mxu0 %v691
    %996 = vmatpush.bf16.msra.mxu0 %v687
    %997 = vmatpush.bf16.msra.mxu0 %v683
    %998 = vmatmul.bf16.gmra.mxu0 %v156
    %v999 = vpop.f32.mrf.mxu0
    %v1000 = vadd.f32 %v291, %v999
    %v1001 = vpop.f32.mrf.mxu0
    %1002 = vdwg.mxu0
    %1003 = vmatpush.bf16.msra.mxu0 %v743
    %1004 = vmatpush.bf16.msra.mxu0 %v739
    %1005 = vmatpush.bf16.msra.mxu0 %v735
    %1006 = vmatpush.bf16.msra.mxu0 %v731
    %1007 = vmatpush.bf16.msra.mxu0 %v727
    %1008 = vmatpush.bf16.msra.mxu0 %v723
    %1009 = vmatpush.bf16.msra.mxu0 %v719
    %1010 = vmatpush.bf16.msra.mxu0 %v715
    %1011 = vmatmul.bf16.gmra.mxu0 %v157
    %v1012 = vpop.f32.mrf.mxu0
    %v1013 = vadd.f32 %v1000, %v1012
    %v1014 = vpop.f32.mrf.mxu0
    %1015 = vdwg.mxu0
    %1016 = vmatpush.bf16.msra.mxu0 %v775
    %1017 = vmatpush.bf16.msra.mxu0 %v771
    %1018 = vmatpush.bf16.msra.mxu0 %v767
    %1019 = vmatpush.bf16.msra.mxu0 %v763
    %1020 = vmatpush.bf16.msra.mxu0 %v759
    %1021 = vmatpush.bf16.msra.mxu0 %v755
    %1022 = vmatpush.bf16.msra.mxu0 %v751
    %1023 = vmatpush.bf16.msra.mxu0 %v747
    %1024 = vmatmul.bf16.gmra.mxu0 %v158
    %v1025 = vpop.f32.mrf.mxu0
    %v1026 = vadd.f32 %v1013, %v1025
    %v1027 = vpop.f32.mrf.mxu0
    %1028 = vdwg.mxu0
    %1029 = vmatpush.bf16.msra.mxu0 %v807
    %1030 = vmatpush.bf16.msra.mxu0 %v803
    %1031 = vmatpush.bf16.msra.mxu0 %v799
    %1032 = vmatpush.bf16.msra.mxu0 %v795
    %1033 = vmatpush.bf16.msra.mxu0 %v791
    %1034 = vmatpush.bf16.msra.mxu0 %v787
    %1035 = vmatpush.bf16.msra.mxu0 %v783
    %1036 = vmatpush.bf16.msra.mxu0 %v779
    %1037 = vmatmul.bf16.gmra.mxu0 %v159
    %v1038 = vpop.f32.mrf.mxu0
    %v1039 = vadd.f32 %v1026, %v1038
    %v1040 = vpop.f32.mrf.mxu0
    %1041 = vdwg.mxu0
    %1042 = vmatpush.bf16.msra.mxu0 %v712
    %1043 = vmatpush.bf16.msra.mxu0 %v708
    %1044 = vmatpush.bf16.msra.mxu0 %v704
    %1045 = vmatpush.bf16.msra.mxu0 %v700
    %1046 = vmatpush.bf16.msra.mxu0 %v696
    %1047 = vmatpush.bf16.msra.mxu0 %v692
    %1048 = vmatpush.bf16.msra.mxu0 %v688
    %1049 = vmatpush.bf16.msra.mxu0 %v684
    %1050 = vmatmul.bf16.gmra.mxu0 %v156
    %v1051 = vpop.f32.mrf.mxu0
    %v1052 = vadd.f32 %v292, %v1051
    %v1053 = vpop.f32.mrf.mxu0
    %1054 = vdwg.mxu0
    %1055 = vmatpush.bf16.msra.mxu0 %v744
    %1056 = vmatpush.bf16.msra.mxu0 %v740
    %1057 = vmatpush.bf16.msra.mxu0 %v736
    %1058 = vmatpush.bf16.msra.mxu0 %v732
    %1059 = vmatpush.bf16.msra.mxu0 %v728
    %1060 = vmatpush.bf16.msra.mxu0 %v724
    %1061 = vmatpush.bf16.msra.mxu0 %v720
    %1062 = vmatpush.bf16.msra.mxu0 %v716
    %1063 = vmatmul.bf16.gmra.mxu0 %v157
    %v1064 = vpop.f32.mrf.mxu0
    %v1065 = vadd.f32 %v1052, %v1064
    %v1066 = vpop.f32.mrf.mxu0
    %1067 = vdwg.mxu0
    %1068 = vmatpush.bf16.msra.mxu0 %v776
    %1069 = vmatpush.bf16.msra.mxu0 %v772
    %1070 = vmatpush.bf16.msra.mxu0 %v768
    %1071 = vmatpush.bf16.msra.mxu0 %v764
    %1072 = vmatpush.bf16.msra.mxu0 %v760
    %1073 = vmatpush.bf16.msra.mxu0 %v756
    %1074 = vmatpush.bf16.msra.mxu0 %v752
    %1075 = vmatpush.bf16.msra.mxu0 %v748
    %1076 = vmatmul.bf16.gmra.mxu0 %v158
    %v1077 = vpop.f32.mrf.mxu0
    %v1078 = vadd.f32 %v1065, %v1077
    %v1079 = vpop.f32.mrf.mxu0
    %1080 = vdwg.mxu0
    %1081 = vmatpush.bf16.msra.mxu0 %v808
    %1082 = vmatpush.bf16.msra.mxu0 %v804
    %1083 = vmatpush.bf16.msra.mxu0 %v800
    %1084 = vmatpush.bf16.msra.mxu0 %v796
    %1085 = vmatpush.bf16.msra.mxu0 %v792
    %1086 = vmatpush.bf16.msra.mxu0 %v788
    %1087 = vmatpush.bf16.msra.mxu0 %v784
    %1088 = vmatpush.bf16.msra.mxu0 %v780
    %1089 = vmatmul.bf16.gmra.mxu0 %v159
    %v1090 = vpop.f32.mrf.mxu0
    %v1091 = vadd.f32 %v1078, %v1090
    %v1092 = vpop.f32.mrf.mxu0
    %1093 = vdwg.mxu0
    %1094 = vmatpush.bf16.msra.mxu0 %v713
    %1095 = vmatpush.bf16.msra.mxu0 %v709
    %1096 = vmatpush.bf16.msra.mxu0 %v705
    %1097 = vmatpush.bf16.msra.mxu0 %v701
    %1098 = vmatpush.bf16.msra.mxu0 %v697
    %1099 = vmatpush.bf16.msra.mxu0 %v693
    %1100 = vmatpush.bf16.msra.mxu0 %v689
    %1101 = vmatpush.bf16.msra.mxu0 %v685
    %1102 = vmatmul.bf16.gmra.mxu0 %v156
    %v1103 = vpop.f32.mrf.mxu0
    %v1104 = vadd.f32 %v293, %v1103
    %v1105 = vpop.f32.mrf.mxu0
    %1106 = vdwg.mxu0
    %1107 = vmatpush.bf16.msra.mxu0 %v745
    %1108 = vmatpush.bf16.msra.mxu0 %v741
    %1109 = vmatpush.bf16.msra.mxu0 %v737
    %1110 = vmatpush.bf16.msra.mxu0 %v733
    %1111 = vmatpush.bf16.msra.mxu0 %v729
    %1112 = vmatpush.bf16.msra.mxu0 %v725
    %1113 = vmatpush.bf16.msra.mxu0 %v721
    %1114 = vmatpush.bf16.msra.mxu0 %v717
    %1115 = vmatmul.bf16.gmra.mxu0 %v157
    %v1116 = vpop.f32.mrf.mxu0
    %v1117 = vadd.f32 %v1104, %v1116
    %v1118 = vpop.f32.mrf.mxu0
    %1119 = vdwg.mxu0
    %1120 = vmatpush.bf16.msra.mxu0 %v777
    %1121 = vmatpush.bf16.msra.mxu0 %v773
    %1122 = vmatpush.bf16.msra.mxu0 %v769
    %1123 = vmatpush.bf16.msra.mxu0 %v765
    %1124 = vmatpush.bf16.msra.mxu0 %v761
    %1125 = vmatpush.bf16.msra.mxu0 %v757
    %1126 = vmatpush.bf16.msra.mxu0 %v753
    %1127 = vmatpush.bf16.msra.mxu0 %v749
    %1128 = vmatmul.bf16.gmra.mxu0 %v158
    %v1129 = vpop.f32.mrf.mxu0
    %v1130 = vadd.f32 %v1117, %v1129
    %v1131 = vpop.f32.mrf.mxu0
    %1132 = vdwg.mxu0
    %1133 = vmatpush.bf16.msra.mxu0 %v809
    %1134 = vmatpush.bf16.msra.mxu0 %v805
    %1135 = vmatpush.bf16.msra.mxu0 %v801
    %1136 = vmatpush.bf16.msra.mxu0 %v797
    %1137 = vmatpush.bf16.msra.mxu0 %v793
    %1138 = vmatpush.bf16.msra.mxu0 %v789
    %1139 = vmatpush.bf16.msra.mxu0 %v785
    %1140 = vmatpush.bf16.msra.mxu0 %v781
    %1141 = vmatmul.bf16.gmra.mxu0 %v159
    %v1142 = vpop.f32.mrf.mxu0
    %v1143 = vadd.f32 %v1130, %v1142
    %v1144 = vpop.f32.mrf.mxu0
    %1145 = vdwg.mxu0
    %v1146 = vmax.f32 %v987, 0.0
    %v1147 = vmax.f32 %v1039, 0.0
    %v1148 = vmax.f32 %v1091, 0.0
    %v1149 = vmax.f32 %v1143, 0.0
    %v1150 = vpack.c.bf16 %v1146, %v1146
    %v1151 = vpack.c.bf16 %v1147, %v1147
    %v1152 = vpack.c.bf16 %v1148, %v1148
    %v1153 = vpack.c.bf16 %v1149, %v1149
    %v1154 = vld [vmem:[%s5] sm:$0xf]
    %v1155 = vld [vmem:[%s5 + $0x4] sm:$0xf]
    %v1156 = vld [vmem:[%s5 + $0x8] sm:$0xf]
    %v1157 = vld [vmem:[%s5 + $0xc] sm:$0xf]
    %v1158 = vld [vmem:[%s5 + $0x10] sm:$0xf]
    %v1159 = vld [vmem:[%s5 + $0x14] sm:$0xf]
    %v1160 = vld [vmem:[%s5 + $0x18] sm:$0xf]
    %v1161 = vld [vmem:[%s5 + $0x1c] sm:$0xf]
    %v1162 = vld [vmem:[%s5 + $0x20] sm:$0xf]
    %v1163 = vld [vmem:[%s5 + $0x24] sm:$0xf]
    %v1164 = vld [vmem:[%s5 + $0x28] sm:$0xf]
    %v1165 = vld [vmem:[%s5 + $0x2c] sm:$0xf]
    %v1166 = vld [vmem:[%s5 + $0x30] sm:$0xf]
    %v1167 = vld [vmem:[%s5 + $0x34] sm:$0xf]
    %v1168 = vld [vmem:[%s5 + $0x38] sm:$0xf]
    %v1169 = vld [vmem:[%s5 + $0x3c] sm:$0xf]
    %v1170 = vld [vmem:[%s5 + $0x40] sm:$0xf]
    %v1171 = vld [vmem:[%s5 + $0x44] sm:$0xf]
    %v1172 = vld [vmem:[%s5 + $0x48] sm:$0xf]
    %v1173 = vld [vmem:[%s5 + $0x4c] sm:$0xf]
    %v1174 = vld [vmem:[%s5 + $0x50] sm:$0xf]
    %v1175 = vld [vmem:[%s5 + $0x54] sm:$0xf]
    %v1176 = vld [vmem:[%s5 + $0x58] sm:$0xf]
    %v1177 = vld [vmem:[%s5 + $0x5c] sm:$0xf]
    %v1178 = vld [vmem:[%s5 + $0x60] sm:$0xf]
    %v1179 = vld [vmem:[%s5 + $0x64] sm:$0xf]
    %v1180 = vld [vmem:[%s5 + $0x68] sm:$0xf]
    %v1181 = vld [vmem:[%s5 + $0x6c] sm:$0xf]
    %v1182 = vld [vmem:[%s5 + $0x70] sm:$0xf]
    %v1183 = vld [vmem:[%s5 + $0x74] sm:$0xf]
    %v1184 = vld [vmem:[%s5 + $0x78] sm:$0xf]
    %v1185 = vld [vmem:[%s5 + $0x7c] sm:$0xf]
    %v1186 = vld [vmem:[%s5 + $0x80] sm:$0xf]
    %v1187 = vld [vmem:[%s5 + $0x84] sm:$0xf]
    %v1188 = vld [vmem:[%s5 + $0x88] sm:$0xf]
    %v1189 = vld [vmem:[%s5 + $0x8c] sm:$0xf]
    %v1190 = vld [vmem:[%s5 + $0x90] sm:$0xf]
    %v1191 = vld [vmem:[%s5 + $0x94] sm:$0xf]
    %v1192 = vld [vmem:[%s5 + $0x98] sm:$0xf]
    %v1193 = vld [vmem:[%s5 + $0x9c] sm:$0xf]
    %v1194 = vld [vmem:[%s5 + $0xa0] sm:$0xf]
    %v1195 = vld [vmem:[%s5 + $0xa4] sm:$0xf]
    %v1196 = vld [vmem:[%s5 + $0xa8] sm:$0xf]
    %v1197 = vld [vmem:[%s5 + $0xac] sm:$0xf]
    %v1198 = vld [vmem:[%s5 + $0xb0] sm:$0xf]
    %v1199 = vld [vmem:[%s5 + $0xb4] sm:$0xf]
    %v1200 = vld [vmem:[%s5 + $0xb8] sm:$0xf]
    %v1201 = vld [vmem:[%s5 + $0xbc] sm:$0xf]
    %v1202 = vld [vmem:[%s5 + $0xc0] sm:$0xf]
    %v1203 = vld [vmem:[%s5 + $0xc4] sm:$0xf]
    %v1204 = vld [vmem:[%s5 + $0xc8] sm:$0xf]
    %v1205 = vld [vmem:[%s5 + $0xcc] sm:$0xf]
    %v1206 = vld [vmem:[%s5 + $0xd0] sm:$0xf]
    %v1207 = vld [vmem:[%s5 + $0xd4] sm:$0xf]
    %v1208 = vld [vmem:[%s5 + $0xd8] sm:$0xf]
    %v1209 = vld [vmem:[%s5 + $0xdc] sm:$0xf]
    %v1210 = vld [vmem:[%s5 + $0xe0] sm:$0xf]
    %v1211 = vld [vmem:[%s5 + $0xe4] sm:$0xf]
    %v1212 = vld [vmem:[%s5 + $0xe8] sm:$0xf]
    %v1213 = vld [vmem:[%s5 + $0xec] sm:$0xf]
    %v1214 = vld [vmem:[%s5 + $0xf0] sm:$0xf]
    %v1215 = vld [vmem:[%s5 + $0xf4] sm:$0xf]
    %v1216 = vld [vmem:[%s5 + $0xf8] sm:$0xf]
    %v1217 = vld [vmem:[%s5 + $0xfc] sm:$0xf]
    %v1218 = vld [vmem:[%s6] sm:$0x1]
    %v1220 = vperm.slane %v1218, 0
    %v1286 = vunpack.c.l.b16 %v1154
    %v1287 = vunpack.c.l.b16 %v1155
    %v1288 = vunpack.c.l.b16 %v1156
    %v1289 = vunpack.c.l.b16 %v1157
    %v1290 = vunpack.c.l.b16 %v1158
    %v1291 = vunpack.c.l.b16 %v1159
    %v1292 = vunpack.c.l.b16 %v1160
    %v1293 = vunpack.c.l.b16 %v1161
    %v1294 = vunpack.c.l.b16 %v1162
    %v1295 = vunpack.c.l.b16 %v1163
    %v1296 = vunpack.c.l.b16 %v1164
    %v1297 = vunpack.c.l.b16 %v1165
    %v1298 = vunpack.c.l.b16 %v1166
    %v1299 = vunpack.c.l.b16 %v1167
    %v1300 = vunpack.c.l.b16 %v1168
    %v1301 = vunpack.c.l.b16 %v1169
    %v1302 = vunpack.c.l.b16 %v1170
    %v1303 = vunpack.c.l.b16 %v1171
    %v1304 = vunpack.c.l.b16 %v1172
    %v1305 = vunpack.c.l.b16 %v1173
    %v1306 = vunpack.c.l.b16 %v1174
    %v1307 = vunpack.c.l.b16 %v1175
    %v1308 = vunpack.c.l.b16 %v1176
    %v1309 = vunpack.c.l.b16 %v1177
    %v1310 = vunpack.c.l.b16 %v1178
    %v1311 = vunpack.c.l.b16 %v1179
    %v1312 = vunpack.c.l.b16 %v1180
    %v1313 = vunpack.c.l.b16 %v1181
    %v1314 = vunpack.c.l.b16 %v1182
    %v1315 = vunpack.c.l.b16 %v1183
    %v1316 = vunpack.c.l.b16 %v1184
    %v1317 = vunpack.c.l.b16 %v1185
    %v1318 = vunpack.c.l.b16 %v1186
    %v1319 = vunpack.c.l.b16 %v1187
    %v1320 = vunpack.c.l.b16 %v1188
    %v1321 = vunpack.c.l.b16 %v1189
    %v1322 = vunpack.c.l.b16 %v1190
    %v1323 = vunpack.c.l.b16 %v1191
    %v1324 = vunpack.c.l.b16 %v1192
    %v1325 = vunpack.c.l.b16 %v1193
    %v1326 = vunpack.c.l.b16 %v1194
    %v1327 = vunpack.c.l.b16 %v1195
    %v1328 = vunpack.c.l.b16 %v1196
    %v1329 = vunpack.c.l.b16 %v1197
    %v1330 = vunpack.c.l.b16 %v1198
    %v1331 = vunpack.c.l.b16 %v1199
    %v1332 = vunpack.c.l.b16 %v1200
    %v1333 = vunpack.c.l.b16 %v1201
    %v1334 = vunpack.c.l.b16 %v1202
    %v1335 = vunpack.c.l.b16 %v1203
    %v1336 = vunpack.c.l.b16 %v1204
    %v1337 = vunpack.c.l.b16 %v1205
    %v1338 = vunpack.c.l.b16 %v1206
    %v1339 = vunpack.c.l.b16 %v1207
    %v1340 = vunpack.c.l.b16 %v1208
    %v1341 = vunpack.c.l.b16 %v1209
    %v1342 = vunpack.c.l.b16 %v1210
    %v1343 = vunpack.c.l.b16 %v1211
    %v1344 = vunpack.c.l.b16 %v1212
    %v1345 = vunpack.c.l.b16 %v1213
    %v1346 = vunpack.c.l.b16 %v1214
    %v1347 = vunpack.c.l.b16 %v1215
    %v1348 = vunpack.c.l.b16 %v1216
    %v1349 = vunpack.c.l.b16 %v1217
    %v1350 = vpack.c.b16 %v1287, %v1286
    %v1351 = vpack.c.b16 %v1289, %v1288
    %v1352 = vpack.c.b16 %v1291, %v1290
    %v1353 = vpack.c.b16 %v1293, %v1292
    %v1354 = vpack.c.b16 %v1295, %v1294
    %v1355 = vpack.c.b16 %v1297, %v1296
    %v1356 = vpack.c.b16 %v1299, %v1298
    %v1357 = vpack.c.b16 %v1301, %v1300
    %v1358 = vpack.c.b16 %v1303, %v1302
    %v1359 = vpack.c.b16 %v1305, %v1304
    %v1360 = vpack.c.b16 %v1307, %v1306
    %v1361 = vpack.c.b16 %v1309, %v1308
    %v1362 = vpack.c.b16 %v1311, %v1310
    %v1363 = vpack.c.b16 %v1313, %v1312
    %v1364 = vpack.c.b16 %v1315, %v1314
    %v1365 = vpack.c.b16 %v1317, %v1316
    %v1366 = vpack.c.b16 %v1319, %v1318
    %v1367 = vpack.c.b16 %v1321, %v1320
    %v1368 = vpack.c.b16 %v1323, %v1322
    %v1369 = vpack.c.b16 %v1325, %v1324
    %v1370 = vpack.c.b16 %v1327, %v1326
    %v1371 = vpack.c.b16 %v1329, %v1328
    %v1372 = vpack.c.b16 %v1331, %v1330
    %v1373 = vpack.c.b16 %v1333, %v1332
    %v1374 = vpack.c.b16 %v1335, %v1334
    %v1375 = vpack.c.b16 %v1337, %v1336
    %v1376 = vpack.c.b16 %v1339, %v1338
    %v1377 = vpack.c.b16 %v1341, %v1340
    %v1378 = vpack.c.b16 %v1343, %v1342
    %v1379 = vpack.c.b16 %v1345, %v1344
    %v1380 = vpack.c.b16 %v1347, %v1346
    %v1381 = vpack.c.b16 %v1349, %v1348
    %1414 = vmatpush.bf16.msra.mxu0 %v1357
    %1415 = vmatpush.bf16.msra.mxu0 %v1356
    %1416 = vmatpush.bf16.msra.mxu0 %v1355
    %1417 = vmatpush.bf16.msra.mxu0 %v1354
    %1418 = vmatpush.bf16.msra.mxu0 %v1353
    %1419 = vmatpush.bf16.msra.mxu0 %v1352
    %1420 = vmatpush.bf16.msra.mxu0 %v1351
    %1421 = vmatpush.bf16.msra.mxu0 %v1350
    %1422 = vmatmul.bf16.gmra.mxu0 %v1150
    %v1423 = vpop.f32.mrf.mxu0
    %v1424 = vadd.f32 %v1220, %v1423
    %v1425 = vpop.f32.mrf.mxu0
    %1426 = vdwg.mxu0
    %1427 = vmatpush.bf16.msra.mxu0 %v1365
    %1428 = vmatpush.bf16.msra.mxu0 %v1364
    %1429 = vmatpush.bf16.msra.mxu0 %v1363
    %1430 = vmatpush.bf16.msra.mxu0 %v1362
    %1431 = vmatpush.bf16.msra.mxu0 %v1361
    %1432 = vmatpush.bf16.msra.mxu0 %v1360
    %1433 = vmatpush.bf16.msra.mxu0 %v1359
    %1434 = vmatpush.bf16.msra.mxu0 %v1358
    %1435 = vmatmul.bf16.gmra.mxu0 %v1151
    %v1436 = vpop.f32.mrf.mxu0
    %v1437 = vadd.f32 %v1424, %v1436
    %v1438 = vpop.f32.mrf.mxu0
    %1439 = vdwg.mxu0
    %1440 = vmatpush.bf16.msra.mxu0 %v1373
    %1441 = vmatpush.bf16.msra.mxu0 %v1372
    %1442 = vmatpush.bf16.msra.mxu0 %v1371
    %1443 = vmatpush.bf16.msra.mxu0 %v1370
    %1444 = vmatpush.bf16.msra.mxu0 %v1369
    %1445 = vmatpush.bf16.msra.mxu0 %v1368
    %1446 = vmatpush.bf16.msra.mxu0 %v1367
    %1447 = vmatpush.bf16.msra.mxu0 %v1366
    %1448 = vmatmul.bf16.gmra.mxu0 %v1152
    %v1449 = vpop.f32.mrf.mxu0
    %v1450 = vadd.f32 %v1437, %v1449
    %v1451 = vpop.f32.mrf.mxu0
    %1452 = vdwg.mxu0
    %1453 = vmatpush.bf16.msra.mxu0 %v1381
    %1454 = vmatpush.bf16.msra.mxu0 %v1380
    %1455 = vmatpush.bf16.msra.mxu0 %v1379
    %1456 = vmatpush.bf16.msra.mxu0 %v1378
    %1457 = vmatpush.bf16.msra.mxu0 %v1377
    %1458 = vmatpush.bf16.msra.mxu0 %v1376
    %1459 = vmatpush.bf16.msra.mxu0 %v1375
    %1460 = vmatpush.bf16.msra.mxu0 %v1374
    %1461 = vmatmul.bf16.gmra.mxu0 %v1153
    %v1462 = vpop.f32.mrf.mxu0
    %v1463 = vadd.f32 %v1450, %v1462
    %v1464 = vpop.f32.mrf.mxu0
    %1465 = vdwg.mxu0
    %v1466 = vld [vmem:[%s7] sm:$0xf]
    %v1467 = vld [vmem:[%s7 + $0x4] sm:$0xf]
    %v1468 = vld [vmem:[%s7 + $0x8] sm:$0xf]
    %v1469 = vld [vmem:[%s7 + $0xc] sm:$0xf]
    %v1470 = vld [vmem:[%s7 + $0x10] sm:$0xf]
    %v1471 = vld [vmem:[%s7 + $0x14] sm:$0xf]
    %v1472 = vld [vmem:[%s7 + $0x18] sm:$0xf]
    %v1473 = vld [vmem:[%s7 + $0x1c] sm:$0xf]
    %v1474 = vld [vmem:[%s7 + $0x20] sm:$0xf]
    %v1475 = vld [vmem:[%s7 + $0x24] sm:$0xf]
    %v1476 = vld [vmem:[%s7 + $0x28] sm:$0xf]
    %v1477 = vld [vmem:[%s7 + $0x2c] sm:$0xf]
    %v1478 = vld [vmem:[%s7 + $0x30] sm:$0xf]
    %v1479 = vld [vmem:[%s7 + $0x34] sm:$0xf]
    %v1480 = vld [vmem:[%s7 + $0x38] sm:$0xf]
    %v1481 = vld [vmem:[%s7 + $0x3c] sm:$0xf]
    %v1482 = vld [vmem:[%s7 + $0x40] sm:$0xf]
    %v1483 = vld [vmem:[%s7 + $0x44] sm:$0xf]
    %v1484 = vld [vmem:[%s7 + $0x48] sm:$0xf]
    %v1485 = vld [vmem:[%s7 + $0x4c] sm:$0xf]
    %v1486 = vld [vmem:[%s7 + $0x50] sm:$0xf]
    %v1487 = vld [vmem:[%s7 + $0x54] sm:$0xf]
    %v1488 = vld [vmem:[%s7 + $0x58] sm:$0xf]
    %v1489 = vld [vmem:[%s7 + $0x5c] sm:$0xf]
    %v1490 = vld [vmem:[%s7 + $0x60] sm:$0xf]
    %v1491 = vld [vmem:[%s7 + $0x64] sm:$0xf]
    %v1492 = vld [vmem:[%s7 + $0x68] sm:$0xf]
    %v1493 = vld [vmem:[%s7 + $0x6c] sm:$0xf]
    %v1494 = vld [vmem:[%s7 + $0x70] sm:$0xf]
    %v1495 = vld [vmem:[%s7 + $0x74] sm:$0xf]
    %v1496 = vld [vmem:[%s7 + $0x78] sm:$0xf]
    %v1497 = vld [vmem:[%s7 + $0x7c] sm:$0xf]
    %v1498 = vld [vmem:[%s7 + $0x80] sm:$0xf]
    %v1499 = vld [vmem:[%s7 + $0x84] sm:$0xf]
    %v1500 = vld [vmem:[%s7 + $0x88] sm:$0xf]
    %v1501 = vld [vmem:[%s7 + $0x8c] sm:$0xf]
    %v1502 = vld [vmem:[%s7 + $0x90] sm:$0xf]
    %v1503 = vld [vmem:[%s7 + $0x94] sm:$0xf]
    %v1504 = vld [vmem:[%s7 + $0x98] sm:$0xf]
    %v1505 = vld [vmem:[%s7 + $0x9c] sm:$0xf]
    %v1506 = vld [vmem:[%s7 + $0xa0] sm:$0xf]
    %v1507 = vld [vmem:[%s7 + $0xa4] sm:$0xf]
    %v1508 = vld [vmem:[%s7 + $0xa8] sm:$0xf]
    %v1509 = vld [vmem:[%s7 + $0xac] sm:$0xf]
    %v1510 = vld [vmem:[%s7 + $0xb0] sm:$0xf]
    %v1511 = vld [vmem:[%s7 + $0xb4] sm:$0xf]
    %v1512 = vld [vmem:[%s7 + $0xb8] sm:$0xf]
    %v1513 = vld [vmem:[%s7 + $0xbc] sm:$0xf]
    %v1514 = vld [vmem:[%s7 + $0xc0] sm:$0xf]
    %v1515 = vld [vmem:[%s7 + $0xc4] sm:$0xf]
    %v1516 = vld [vmem:[%s7 + $0xc8] sm:$0xf]
    %v1517 = vld [vmem:[%s7 + $0xcc] sm:$0xf]
    %v1518 = vld [vmem:[%s7 + $0xd0] sm:$0xf]
    %v1519 = vld [vmem:[%s7 + $0xd4] sm:$0xf]
    %v1520 = vld [vmem:[%s7 + $0xd8] sm:$0xf]
    %v1521 = vld [vmem:[%s7 + $0xdc] sm:$0xf]
    %v1522 = vld [vmem:[%s7 + $0xe0] sm:$0xf]
    %v1523 = vld [vmem:[%s7 + $0xe4] sm:$0xf]
    %v1524 = vld [vmem:[%s7 + $0xe8] sm:$0xf]
    %v1525 = vld [vmem:[%s7 + $0xec] sm:$0xf]
    %v1526 = vld [vmem:[%s7 + $0xf0] sm:$0xf]
    %v1527 = vld [vmem:[%s7 + $0xf4] sm:$0xf]
    %v1528 = vld [vmem:[%s7 + $0xf8] sm:$0xf]
    %v1529 = vld [vmem:[%s7 + $0xfc] sm:$0xf]
    %v1530 = vld [vmem:[%s8] sm:$0x1]
    %v1532 = vperm.slane %v1530, 0
    %v1598 = vunpack.c.l.b16 %v1466
    %v1599 = vunpack.c.l.b16 %v1467
    %v1600 = vunpack.c.l.b16 %v1468
    %v1601 = vunpack.c.l.b16 %v1469
    %v1602 = vunpack.c.l.b16 %v1470
    %v1603 = vunpack.c.l.b16 %v1471
    %v1604 = vunpack.c.l.b16 %v1472
    %v1605 = vunpack.c.l.b16 %v1473
    %v1606 = vunpack.c.l.b16 %v1474
    %v1607 = vunpack.c.l.b16 %v1475
    %v1608 = vunpack.c.l.b16 %v1476
    %v1609 = vunpack.c.l.b16 %v1477
    %v1610 = vunpack.c.l.b16 %v1478
    %v1611 = vunpack.c.l.b16 %v1479
    %v1612 = vunpack.c.l.b16 %v1480
    %v1613 = vunpack.c.l.b16 %v1481
    %v1614 = vunpack.c.l.b16 %v1482
    %v1615 = vunpack.c.l.b16 %v1483
    %v1616 = vunpack.c.l.b16 %v1484
    %v1617 = vunpack.c.l.b16 %v1485
    %v1618 = vunpack.c.l.b16 %v1486
    %v1619 = vunpack.c.l.b16 %v1487
    %v1620 = vunpack.c.l.b16 %v1488
    %v1621 = vunpack.c.l.b16 %v1489
    %v1622 = vunpack.c.l.b16 %v1490
    %v1623 = vunpack.c.l.b16 %v1491
    %v1624 = vunpack.c.l.b16 %v1492
    %v1625 = vunpack.c.l.b16 %v1493
    %v1626 = vunpack.c.l.b16 %v1494
    %v1627 = vunpack.c.l.b16 %v1495
    %v1628 = vunpack.c.l.b16 %v1496
    %v1629 = vunpack.c.l.b16 %v1497
    %v1630 = vunpack.c.l.b16 %v1498
    %v1631 = vunpack.c.l.b16 %v1499
    %v1632 = vunpack.c.l.b16 %v1500
    %v1633 = vunpack.c.l.b16 %v1501
    %v1634 = vunpack.c.l.b16 %v1502
    %v1635 = vunpack.c.l.b16 %v1503
    %v1636 = vunpack.c.l.b16 %v1504
    %v1637 = vunpack.c.l.b16 %v1505
    %v1638 = vunpack.c.l.b16 %v1506
    %v1639 = vunpack.c.l.b16 %v1507
    %v1640 = vunpack.c.l.b16 %v1508
    %v1641 = vunpack.c.l.b16 %v1509
    %v1642 = vunpack.c.l.b16 %v1510
    %v1643 = vunpack.c.l.b16 %v1511
    %v1644 = vunpack.c.l.b16 %v1512
    %v1645 = vunpack.c.l.b16 %v1513
    %v1646 = vunpack.c.l.b16 %v1514
    %v1647 = vunpack.c.l.b16 %v1515
    %v1648 = vunpack.c.l.b16 %v1516
    %v1649 = vunpack.c.l.b16 %v1517
    %v1650 = vunpack.c.l.b16 %v1518
    %v1651 = vunpack.c.l.b16 %v1519
    %v1652 = vunpack.c.l.b16 %v1520
    %v1653 = vunpack.c.l.b16 %v1521
    %v1654 = vunpack.c.l.b16 %v1522
    %v1655 = vunpack.c.l.b16 %v1523
    %v1656 = vunpack.c.l.b16 %v1524
    %v1657 = vunpack.c.l.b16 %v1525
    %v1658 = vunpack.c.l.b16 %v1526
    %v1659 = vunpack.c.l.b16 %v1527
    %v1660 = vunpack.c.l.b16 %v1528
    %v1661 = vunpack.c.l.b16 %v1529
    %v1662 = vpack.c.b16 %v1599, %v1598
    %v1663 = vpack.c.b16 %v1601, %v1600
    %v1664 = vpack.c.b16 %v1603, %v1602
    %v1665 = vpack.c.b16 %v1605, %v1604
    %v1666 = vpack.c.b16 %v1607, %v1606
    %v1667 = vpack.c.b16 %v1609, %v1608
    %v1668 = vpack.c.b16 %v1611, %v1610
    %v1669 = vpack.c.b16 %v1613, %v1612
    %v1670 = vpack.c.b16 %v1615, %v1614
    %v1671 = vpack.c.b16 %v1617, %v1616
    %v1672 = vpack.c.b16 %v1619, %v1618
    %v1673 = vpack.c.b16 %v1621, %v1620
    %v1674 = vpack.c.b16 %v1623, %v1622
    %v1675 = vpack.c.b16 %v1625, %v1624
    %v1676 = vpack.c.b16 %v1627, %v1626
    %v1677 = vpack.c.b16 %v1629, %v1628
    %v1678 = vpack.c.b16 %v1631, %v1630
    %v1679 = vpack.c.b16 %v1633, %v1632
    %v1680 = vpack.c.b16 %v1635, %v1634
    %v1681 = vpack.c.b16 %v1637, %v1636
    %v1682 = vpack.c.b16 %v1639, %v1638
    %v1683 = vpack.c.b16 %v1641, %v1640
    %v1684 = vpack.c.b16 %v1643, %v1642
    %v1685 = vpack.c.b16 %v1645, %v1644
    %v1686 = vpack.c.b16 %v1647, %v1646
    %v1687 = vpack.c.b16 %v1649, %v1648
    %v1688 = vpack.c.b16 %v1651, %v1650
    %v1689 = vpack.c.b16 %v1653, %v1652
    %v1690 = vpack.c.b16 %v1655, %v1654
    %v1691 = vpack.c.b16 %v1657, %v1656
    %v1692 = vpack.c.b16 %v1659, %v1658
    %v1693 = vpack.c.b16 %v1661, %v1660
    %1726 = vmatpush.bf16.msra.mxu0 %v1669
    %1727 = vmatpush.bf16.msra.mxu0 %v1668
    %1728 = vmatpush.bf16.msra.mxu0 %v1667
    %1729 = vmatpush.bf16.msra.mxu0 %v1666
    %1730 = vmatpush.bf16.msra.mxu0 %v1665
    %1731 = vmatpush.bf16.msra.mxu0 %v1664
    %1732 = vmatpush.bf16.msra.mxu0 %v1663
    %1733 = vmatpush.bf16.msra.mxu0 %v1662
    %1734 = vmatmul.bf16.gmra.mxu0 %v1150
    %v1735 = vpop.f32.mrf.mxu0
    %v1736 = vadd.f32 %v1532, %v1735
    %v1737 = vpop.f32.mrf.mxu0
    %1738 = vdwg.mxu0
    %1739 = vmatpush.bf16.msra.mxu0 %v1677
    %1740 = vmatpush.bf16.msra.mxu0 %v1676
    %1741 = vmatpush.bf16.msra.mxu0 %v1675
    %1742 = vmatpush.bf16.msra.mxu0 %v1674
    %1743 = vmatpush.bf16.msra.mxu0 %v1673
    %1744 = vmatpush.bf16.msra.mxu0 %v1672
    %1745 = vmatpush.bf16.msra.mxu0 %v1671
    %1746 = vmatpush.bf16.msra.mxu0 %v1670
    %1747 = vmatmul.bf16.gmra.mxu0 %v1151
    %v1748 = vpop.f32.mrf.mxu0
    %v1749 = vadd.f32 %v1736, %v1748
    %v1750 = vpop.f32.mrf.mxu0
    %1751 = vdwg.mxu0
    %1752 = vmatpush.bf16.msra.mxu0 %v1685
    %1753 = vmatpush.bf16.msra.mxu0 %v1684
    %1754 = vmatpush.bf16.msra.mxu0 %v1683
    %1755 = vmatpush.bf16.msra.mxu0 %v1682
    %1756 = vmatpush.bf16.msra.mxu0 %v1681
    %1757 = vmatpush.bf16.msra.mxu0 %v1680
    %1758 = vmatpush.bf16.msra.mxu0 %v1679
    %1759 = vmatpush.bf16.msra.mxu0 %v1678
    %1760 = vmatmul.bf16.gmra.mxu0 %v1152
    %v1761 = vpop.f32.mrf.mxu0
    %v1762 = vadd.f32 %v1749, %v1761
    %v1763 = vpop.f32.mrf.mxu0
    %1764 = vdwg.mxu0
    %1765 = vmatpush.bf16.msra.mxu0 %v1693
    %1766 = vmatpush.bf16.msra.mxu0 %v1692
    %1767 = vmatpush.bf16.msra.mxu0 %v1691
    %1768 = vmatpush.bf16.msra.mxu0 %v1690
    %1769 = vmatpush.bf16.msra.mxu0 %v1689
    %1770 = vmatpush.bf16.msra.mxu0 %v1688
    %1771 = vmatpush.bf16.msra.mxu0 %v1687
    %1772 = vmatpush.bf16.msra.mxu0 %v1686
    %1773 = vmatmul.bf16.gmra.mxu0 %v1153
    %v1774 = vpop.f32.mrf.mxu0
    %v1775 = vadd.f32 %v1762, %v1774
    %v1776 = vpop.f32.mrf.mxu0
    %1777 = vdwg.mxu0
    %v1778 = vsub.f32 0.0, %v1775
    %v1779 = vmul.f32 %v1778, 1.442695
    %v1780 = vpow.pop %v1779
    %v1781 = vadd.f32 %v1780, 1.0
    %v1782 = vrcp.pop %v1781
    %v1783 = vmul.f32 %v1781, %v1782
    %v1784 = vsub.f32 1.0, %v1783
    %v1785 = vmul.f32 %v1782, %v1784
    %v1786 = vadd.f32 %v1782, %v1785
    %vm1787 = vweird.f32 %v1781
    %vm1788 = vweird.f32 %v1782
    %vm1789 = vmor %vm1787, %vm1788
    %v1790 = vsel %vm1789, %v1782, %v1786
    %v1791 = vand.u32 2147483647, %v1781
    %vm1792 = vcmp.eq.f32.partialorder %v1791, 8.507059e+37
    %v1793 = vand.u32 %v1781, 2147483648
    %v1794 = vor.u32 1.1754944e-38, %v1793
    %v1795 = vsel %vm1792, %v1794, %v1790
    %v1796 = vmul.f32 1.0, %v1795
    %v1797 = vmax.f32 %v1796, 1e-06
    %v1798 = vmin.f32 %v1797, 1.0
    %vm1799 = vcmask 31744
    %1800 = vst.msk [vmem:[%s9] sm:$0xff] %vm1799, %v1463
    %1801 = vst.msk [vmem:[%s10] sm:$0xff] %vm1799, %v1798
    // Predicated region
    $region42: #{tpu_custom_call.1} parent=1 // pred_check
      _
    $region43: #{tpu_custom_call.1} parent=1 // pred_check_branch
      %1803 = sbr.rel (0) target = $region45
    $region44: #{tpu_custom_call.1} parent=1 // pred_region
      _
    $region45: #{tpu_custom_call.1} parent=1 // pred_fallthru
      _
    // Predicated region
    $region46: #{tpu_custom_call.1} parent=1 // pred_check
      _
    $region47: #{tpu_custom_call.1} parent=1 // pred_check_branch
      %1805 = sbr.rel (0) target = $region49
    $region48: #{tpu_custom_call.1} parent=1 // pred_region
      _
    $region49: #{tpu_custom_call.1} parent=1 // pred_fallthru
      _
    // Predicated region
    $region50: #{tpu_custom_call.1} parent=1 // pred_check
      _
    $region51: #{tpu_custom_call.1} parent=1 // pred_check_branch
      %1807 = sbr.rel (0) target = $region53
    $region52: #{tpu_custom_call.1} parent=1 // pred_region
      _
    $region53: #{tpu_custom_call.1} parent=1 // pred_fallthru
      _
    // Predicated region
    $region54: #{tpu_custom_call.1} parent=1 // pred_check
      _
    $region55: #{tpu_custom_call.1} parent=1 // pred_check_branch
      %1809 = sbr.rel (0) target = $region57
    $region56: #{tpu_custom_call.1} parent=1 // pred_region
      _
    $region57: #{tpu_custom_call.1} parent=1 // pred_fallthru
      _
    %1810 = vsyncpa [#allocation3], 1

</llo_original>
